<compile_context>
chip_gen: v5e
topology: v5e:2x2
jax: 0.10.0
libtpu: 0.0.40
codegen_flags: <defaults>
</compile_context>

<pallas_src>
import functools

import jax
import jax.numpy as jnp
import numpy as np
from jax.experimental import pallas as pl
from jax.experimental.pallas import tpu as pltpu


# ----------------- Fused kernel: semantic aggregation + self-attention -----------------
def _fused_kernel(feats_ref, xq_ref, preds_ref,
                  wq1_ref, bq1_ref, wq2_ref, bq2_ref,
                  wk1_ref, bk1_ref, wk2_ref, bk2_ref,
                  wv_ref, bv_ref, wo_ref, bo_ref,
                  out_ref, k_scr, v_scr, *, scale):
    """Grid = (batch, query_tile).

    feats_ref : (C, L)  bf16  full per-batch features (channel-major), resident across tiles
    xq_ref    : (C, TQ) bf16  query tile of the same features
    preds_ref : (K, L)  f32   class logits
    w*_ref    : (Cout, Cin) bf16 folded conv1x1+BN weights ; b*_ref : (Cout, 1) f32 biases
    out_ref   : (C, TQ) f32
    k_scr/v_scr : (Ct, L) bf16 VMEM scratch holding key/value projections of feats_sl
    """

    def proj(z, w_ref, b_ref):
        # 1x1 Conv2d(bias=False) + folded eval-mode BatchNorm + ReLU, channel-major.
        return jnp.maximum(
            jnp.dot(w_ref[...], z, preferred_element_type=jnp.float32) + b_ref[...],
            0.0)

    # ---- once per batch (query-tile 0): aggregation + key/value projections ----
    @pl.when(pl.program_id(1) == 0)
    def _build_key_value():
        feats = feats_ref[...]                            # (C, L) bf16
        preds = preds_ref[...]                            # (K, L) f32
        num_classes, L = preds.shape
        C = feats.shape[0]

        # per-pixel argmax over classes (first-max tie-break, like torch.argmax)
        k_iota = jax.lax.broadcasted_iota(jnp.int32, (num_classes, L), 0)
        col_max = jnp.max(preds, axis=0, keepdims=True)                     # (1, L)
        is_max = preds >= col_max
        first_idx = jnp.min(jnp.where(is_max, k_iota, num_classes),
                            axis=0, keepdims=True)                          # (1, L)
        onehot = k_iota == first_idx                                        # (K, L)

        # per-class softmax over that class' pixels (exp on masked logits only)
        masked = jnp.where(onehot, preds, jnp.float32(-1e30))
        row_max = jnp.max(masked, axis=1, keepdims=True)                    # (K, 1)
        e = jnp.where(onehot, jnp.exp(masked - row_max), 0.0)               # (K, L)
        den = jnp.sum(e, axis=1, keepdims=True)                             # (K, 1)
        w = e / jnp.where(den > 0, den, 1.0)                                # (K, L)

        # class-wise weighted feature sums: (C, K); contraction over L, no transpose
        cls_feats = jax.lax.dot_general(
            feats, w.astype(jnp.bfloat16),
            dimension_numbers=(((1,), (1,)), ((), ())),
            preferred_element_type=jnp.float32)                             # (C, K)

        # scatter back to pixels: feats_sl[:, l] = cls_feats[:, argmax[l]]
        if num_classes <= 16:
            # small K: VPU select tree instead of a tiny K-contraction MXU matmul
            sl = jnp.zeros((C, L), jnp.float32)
            for c in range(num_classes):
                sl = jnp.where(first_idx == c, cls_feats[:, c:c + 1], sl)
        else:
            sl = jnp.dot(cls_feats.astype(jnp.bfloat16),
                         onehot.astype(jnp.bfloat16),
                         preferred_element_type=jnp.float32)
        sl = sl.astype(jnp.bfloat16)                                        # (C, L)

        # key_project (2 convs) and value_project (1 conv) over the full batch, once
        k1 = proj(sl, wk1_ref, bk1_ref).astype(jnp.bfloat16)
        k_scr[...] = proj(k1, wk2_ref, bk2_ref).astype(jnp.bfloat16)        # (Ct, L)
        v_scr[...] = proj(sl, wv_ref, bv_ref).astype(jnp.bfloat16)          # (Ct, L)

    # ---- per query tile: query projection + exact softmax attention + out_project ----
    x_tile = xq_ref[...]                                                    # (C, TQ) bf16
    q1 = proj(x_tile, wq1_ref, bq1_ref).astype(jnp.bfloat16)
    # matmul_norm: fold Ct**-0.5 into q (Ct x TQ) instead of scaling sim (TQ x L)
    q = (proj(q1, wq2_ref, bq2_ref) * scale).astype(jnp.bfloat16)           # (Ct, TQ)

    sim = jax.lax.dot_general(q, k_scr[...],
                              dimension_numbers=(((0,), (0,)), ((), ())),
                              preferred_element_type=jnp.float32)           # (TQ, L)
    m = jnp.max(sim, axis=-1, keepdims=True)
    p = jnp.exp(sim - m)
    den = jnp.sum(p, axis=-1, keepdims=True)
    p = (p * pl.reciprocal(den, approx=True)).astype(jnp.bfloat16)          # (TQ, L)

    ctx = jax.lax.dot_general(v_scr[...], p,
                              dimension_numbers=(((1,), (1,)), ((), ())),
                              preferred_element_type=jnp.float32)           # (Ct, TQ)

    out_ref[...] = proj(ctx.astype(jnp.bfloat16), wo_ref, bo_ref)           # (C, TQ) f32


# ----------------- Wrapper -----------------
def semantic_level_context_forward(x, preds, feats_il, params, transform_channels):
    """x: (B, C, H, W), preds: (B, K, H, W), feats_il: (B, C, H, W) (unused)."""
    B, C, H, W = x.shape
    K = preds.shape[1]
    L = H * W
    Ct = transform_channels
    TQ = 128 if L % 128 == 0 else L     # lane-dense query tile (multiple of 128)
    NQ = L // TQ

    # channel-major: lane dim is L; NCHW -> (B, C, L) is a pure reshape (no transposes)
    feats = x.reshape(B, C, L).astype(jnp.bfloat16)
    logits = preds.reshape(B, K, L).astype(jnp.float32)

    # folded conv+BN parameters; weight matrices go to the MXU in bf16, biases stay f32.
    # (Weights are constant-index and tiny; default double-buffering cost is negligible here.
    #  At production sizes, pipeline_mode=pl.Buffered(1) can reclaim that VMEM.)
    wnames = ('wq1', 'bq1', 'wq2', 'bq2', 'wk1', 'bk1',
              'wk2', 'bk2', 'wv', 'bv', 'wo', 'bo')
    wargs, wspecs = [], []
    for n in wnames:
        p = params[n]
        if n[0] == 'w':
            p = p.astype(jnp.bfloat16)
        wargs.append(p)
        wspecs.append(pl.BlockSpec(p.shape, lambda b, q: (0, 0)))

    kern = functools.partial(_fused_kernel, scale=float(Ct) ** -0.5)
    out = pl.pallas_call(
        kern,
        out_shape=jax.ShapeDtypeStruct((B, C, L), jnp.float32),
        grid=(B, NQ),
        in_specs=[pl.BlockSpec((None, C, L), lambda b, q: (b, 0, 0)),    # full feats (agg + K/V)
                  pl.BlockSpec((None, C, TQ), lambda b, q: (b, 0, q)),   # query tile
                  pl.BlockSpec((None, K, L), lambda b, q: (b, 0, 0))]    # class logits
                 + wspecs,
        out_specs=pl.BlockSpec((None, C, TQ), lambda b, q: (b, 0, q)),
        scratch_shapes=[pltpu.VMEM((Ct, L), jnp.bfloat16),   # keys of feats_sl
                        pltpu.VMEM((Ct, L), jnp.bfloat16)],  # values of feats_sl
        compiler_params=pltpu.CompilerParams(
            dimension_semantics=("parallel", "arbitrary")),
    )(feats, feats, logits, *wargs)

    # concat_input=False -> no bottleneck; feats_il intentionally unused.
    del feats_il
    return out.reshape(B, C, H, W)


# ----------------- Deterministic synthetic parameters (1x1 conv + BN folded) -----------------
def _fold_conv_bn(conv_w, gamma, beta, mean, var, eps=1e-5):
    # conv_w: (Cout, Cin) from 1x1 Conv2d (bias=False); BatchNorm folded in eval mode.
    # Kept channel-major: y = W_eff @ x + b_eff for channel-major x (Cin, L).
    scale = gamma / jnp.sqrt(var + eps)
    w_eff = conv_w * scale[:, None]                      # (Cout, Cin)
    b_eff = (beta - mean * scale)[:, None]               # (Cout, 1)
    return w_eff.astype(jnp.float32), b_eff.astype(jnp.float32)


def init_params(key, C, Ct):
    def conv_bn(k, cin, cout):
        kw, kg, kb, km, kv = jax.random.split(k, 5)
        w = 0.2 * jax.random.normal(kw, (cout, cin), jnp.float32)
        gamma = 1.0 + 0.1 * jax.random.normal(kg, (cout,), jnp.float32)
        beta = 0.1 * jax.random.normal(kb, (cout,), jnp.float32)
        mean = 0.1 * jax.random.normal(km, (cout,), jnp.float32)
        var = 1.0 + 0.1 * jnp.abs(jax.random.normal(kv, (cout,), jnp.float32))
        return _fold_conv_bn(w, gamma, beta, mean, var)

    keys = jax.random.split(key, 6)
    p = {}
    p['wq1'], p['bq1'] = conv_bn(keys[0], C, Ct)
    p['wq2'], p['bq2'] = conv_bn(keys[1], Ct, Ct)
    p['wk1'], p['bk1'] = conv_bn(keys[2], C, Ct)
    p['wk2'], p['bk2'] = conv_bn(keys[3], Ct, Ct)
    p['wv'],  p['bv']  = conv_bn(keys[4], C, Ct)
    p['wo'],  p['bo']  = conv_bn(keys[5], Ct, C)
    return p


# ----------------- Pure-JAX reference (mirrors the PyTorch forward, full f32) -----------------
def reference_forward(x, preds, params, Ct):
    B, C, H, W = x.shape
    K = preds.shape[1]
    L = H * W
    hp = jax.lax.Precision.HIGHEST
    feats = jnp.transpose(x.reshape(B, C, L), (0, 2, 1))        # (B, L, C)
    logits = jnp.transpose(preds.reshape(B, K, L), (0, 2, 1))   # (B, L, K)

    def agg(f, p):
        am = jnp.argmax(p, axis=-1)
        onehot = jax.nn.one_hot(am, K, dtype=f.dtype)
        mask = onehot > 0
        masked = jnp.where(mask, p, -1e30)
        colmax = jnp.max(masked, axis=0, keepdims=True)
        e = jnp.where(mask, jnp.exp(masked - colmax), 0.0)
        den = jnp.sum(e, axis=0, keepdims=True)
        w = e / jnp.where(den > 0, den, 1.0)
        cls = jnp.einsum('lk,lc->kc', w, f, precision=hp)
        return jnp.einsum('lk,kc->lc', onehot, cls, precision=hp)

    feats_sl = jax.vmap(agg)(feats, logits)

    def proj(z, w, b):   # w: (Cout, Cin), b: (Cout, 1)
        return jnp.maximum(jnp.einsum('blc,oc->blo', z, w, precision=hp) + b[:, 0], 0.0)

    q = proj(proj(feats, params['wq1'], params['bq1']), params['wq2'], params['bq2'])
    k = proj(proj(feats_sl, params['wk1'], params['bk1']), params['wk2'], params['bk2'])
    v = proj(feats_sl, params['wv'], params['bv'])
    sim = jnp.einsum('blc,bmc->blm', q, k, precision=hp) * (Ct ** -0.5)
    sim = jax.nn.softmax(sim, axis=-1)
    ctx = jnp.einsum('blm,bmc->blc', sim, v, precision=hp)
    out = proj(ctx, params['wo'], params['bo'])
    return jnp.transpose(out, (0, 2, 1)).reshape(B, C, H, W)


if __name__ == "__main__":
    B, C, Ct, K, H, W = 2, 32, 16, 8, 16, 16   # feats_channels=32, transform_channels=16
    key = jax.random.PRNGKey(0)
    kx, kp, kf, kparam = jax.random.split(key, 4)
    x = jax.random.normal(kx, (B, C, H, W), jnp.float32)
    preds = jax.random.normal(kp, (B, K, H, W), jnp.float32)
    feats_il = jax.random.normal(kf, (B, C, H, W), jnp.float32)
    params = init_params(kparam, C, Ct)

    out = semantic_level_context_forward(x, preds, feats_il, params, Ct)
    out = jax.block_until_ready(out)

    ref = reference_forward(x, preds, params, Ct)
    np.testing.assert_allclose(np.asarray(out), np.asarray(ref), rtol=2e-2, atol=2e-2)
    print("KERNEL_OK")
</pallas_src>

<mosaic_0001>
module attributes {stable_mosaic.version = 11 : i64} {
  func.func @_fused_kernel(%arg0: i32, %arg1: i32, %arg2: memref<1x32x256xbf16, #tpu.memory_space<vmem>>, %arg3: memref<1x32x128xbf16, #tpu.memory_space<vmem>>, %arg4: memref<1x8x256xf32, #tpu.memory_space<vmem>>, %arg5: memref<16x32xbf16, #tpu.memory_space<vmem>>, %arg6: memref<16x1xf32, #tpu.memory_space<vmem>>, %arg7: memref<16x16xbf16, #tpu.memory_space<vmem>>, %arg8: memref<16x1xf32, #tpu.memory_space<vmem>>, %arg9: memref<16x32xbf16, #tpu.memory_space<vmem>>, %arg10: memref<16x1xf32, #tpu.memory_space<vmem>>, %arg11: memref<16x16xbf16, #tpu.memory_space<vmem>>, %arg12: memref<16x1xf32, #tpu.memory_space<vmem>>, %arg13: memref<16x32xbf16, #tpu.memory_space<vmem>>, %arg14: memref<16x1xf32, #tpu.memory_space<vmem>>, %arg15: memref<32x16xbf16, #tpu.memory_space<vmem>>, %arg16: memref<32x1xf32, #tpu.memory_space<vmem>>, %arg17: memref<1x32x128xf32, #tpu.memory_space<vmem>>, %arg18: memref<16x256xbf16, #tpu.memory_space<vmem>>, %arg19: memref<16x256xbf16, #tpu.memory_space<vmem>>) attributes {dimension_semantics = [#tpu.dimension_semantics<parallel>, #tpu.dimension_semantics<arbitrary>], iteration_bounds = array<i64: 2, 2>, scalar_prefetch = 0 : i64, scratch_operands = 2 : i64, tpu.core_type = #tpu.core_type<tc>, window_params = [{transform_indices = @transform_0, window_bounds = array<i64: 1, 32, 256>}, {transform_indices = @transform_1, window_bounds = array<i64: 1, 32, 128>}, {transform_indices = @transform_2, window_bounds = array<i64: 1, 8, 256>}, {pipeline_mode = #tpu.pipeline_mode<synchronous>, transform_indices = @transform_3, window_bounds = array<i64: 16, 32>}, {pipeline_mode = #tpu.pipeline_mode<synchronous>, transform_indices = @transform_4, window_bounds = array<i64: 16, 1>}, {pipeline_mode = #tpu.pipeline_mode<synchronous>, transform_indices = @transform_5, window_bounds = array<i64: 16, 16>}, {pipeline_mode = #tpu.pipeline_mode<synchronous>, transform_indices = @transform_6, window_bounds = array<i64: 16, 1>}, {pipeline_mode = #tpu.pipeline_mode<synchronous>, transform_indices = @transform_7, window_bounds = array<i64: 16, 32>}, {pipeline_mode = #tpu.pipeline_mode<synchronous>, transform_indices = @transform_8, window_bounds = array<i64: 16, 1>}, {pipeline_mode = #tpu.pipeline_mode<synchronous>, transform_indices = @transform_9, window_bounds = array<i64: 16, 16>}, {pipeline_mode = #tpu.pipeline_mode<synchronous>, transform_indices = @transform_10, window_bounds = array<i64: 16, 1>}, {pipeline_mode = #tpu.pipeline_mode<synchronous>, transform_indices = @transform_11, window_bounds = array<i64: 16, 32>}, {pipeline_mode = #tpu.pipeline_mode<synchronous>, transform_indices = @transform_12, window_bounds = array<i64: 16, 1>}, {pipeline_mode = #tpu.pipeline_mode<synchronous>, transform_indices = @transform_13, window_bounds = array<i64: 32, 16>}, {pipeline_mode = #tpu.pipeline_mode<synchronous>, transform_indices = @transform_14, window_bounds = array<i64: 32, 1>}, {transform_indices = @transform_15, window_bounds = array<i64: 1, 32, 128>}]} {
    %c0_i32 = arith.constant 0 : i32
    %0 = arith.cmpi eq, %arg1, %c0_i32 : i32
    %1 = arith.extui %0 : i1 to i32
    %c0_i32_0 = arith.constant 0 : i32
    %2 = arith.cmpi ne, %1, %c0_i32_0 : i32
    scf.if %2 {
      %c0_32 = arith.constant 0 : index
      %c0_33 = arith.constant 0 : index
      %c0_34 = arith.constant 0 : index
      %49 = vector.load %arg2[%c0_32, %c0_33, %c0_34] : memref<1x32x256xbf16, #tpu.memory_space<vmem>>, vector<1x32x256xbf16>
      %50 = vector.shape_cast %49 : vector<1x32x256xbf16> to vector<32x256xbf16>
      %c0_35 = arith.constant 0 : index
      %c0_36 = arith.constant 0 : index
      %c0_37 = arith.constant 0 : index
      %51 = vector.load %arg4[%c0_35, %c0_36, %c0_37] : memref<1x8x256xf32, #tpu.memory_space<vmem>>, vector<1x8x256xf32>
      %52 = vector.shape_cast %51 : vector<1x8x256xf32> to vector<8x256xf32>
      %53 = tpu.iota {dimensions = array<i32: 0>} : vector<8x256xi32>
      %cst_38 = arith.constant dense<0xFF800000> : vector<256xf32>
      %54 = vector.multi_reduction <maximumf>, %52, %cst_38 [0] : vector<8x256xf32> to vector<256xf32>
      %55 = vector.shape_cast %54 : vector<256xf32> to vector<1x256xf32>
      %56 = vector.broadcast %55 : vector<1x256xf32> to vector<8x256xf32>
      %57 = arith.cmpf oge, %52, %56 : vector<8x256xf32>
      %c8_i32 = arith.constant 8 : i32
      %58 = vector.broadcast %c8_i32 : i32 to vector<8x256xi32>
      %59 = arith.select %57, %53, %58 : vector<8x256xi1>, vector<8x256xi32>
      %cst_39 = arith.constant dense<2147483647> : vector<256xi32>
      %60 = vector.multi_reduction <minsi>, %59, %cst_39 [0] : vector<8x256xi32> to vector<256xi32>
      %61 = vector.shape_cast %60 : vector<256xi32> to vector<1x256xi32>
      %62 = vector.broadcast %61 : vector<1x256xi32> to vector<8x256xi32>
      %63 = arith.cmpi eq, %53, %62 : vector<8x256xi32>
      %cst_40 = arith.constant -1.000000e+30 : f32
      %64 = vector.broadcast %cst_40 : f32 to vector<8x256xf32>
      %65 = arith.select %63, %52, %64 : vector<8x256xi1>, vector<8x256xf32>
      %cst_41 = arith.constant dense<0xFF800000> : vector<8xf32>
      %66 = vector.multi_reduction <maximumf>, %65, %cst_41 [1] : vector<8x256xf32> to vector<8xf32>
      %67 = vector.shape_cast %66 : vector<8xf32> to vector<8x1xf32>
      %68 = vector.broadcast %67 : vector<8x1xf32> to vector<8x256xf32>
      %69 = arith.subf %65, %68 : vector<8x256xf32>
      %70 = math.exp %69 : vector<8x256xf32>
      %cst_42 = arith.constant 0.000000e+00 : f32
      %71 = vector.broadcast %cst_42 : f32 to vector<8x256xf32>
      %72 = arith.select %63, %70, %71 : vector<8x256xi1>, vector<8x256xf32>
      %cst_43 = arith.constant dense<0.000000e+00> : vector<8xf32>
      %73 = vector.multi_reduction <add>, %72, %cst_43 [1] : vector<8x256xf32> to vector<8xf32>
      %74 = vector.shape_cast %73 : vector<8xf32> to vector<8x1xf32>
      %cst_44 = arith.constant 0.000000e+00 : f32
      %75 = vector.broadcast %cst_44 : f32 to vector<8x1xf32>
      %76 = arith.cmpf ogt, %74, %75 : vector<8x1xf32>
      %cst_45 = arith.constant 1.000000e+00 : f32
      %77 = vector.broadcast %cst_45 : f32 to vector<8x1xf32>
      %78 = arith.select %76, %74, %77 : vector<8x1xi1>, vector<8x1xf32>
      %79 = vector.broadcast %78 : vector<8x1xf32> to vector<8x256xf32>
      %80 = arith.divf %72, %79 : vector<8x256xf32>
      %81 = arith.truncf %80 : vector<8x256xf32> to vector<8x256xbf16>
      %cst_46 = arith.constant dense<0.000000e+00> : vector<32x8xf32>
      %82 = tpu.matmul %50, %81, %cst_46 {dimension_numbers = #tpu.dot_dimension_numbers<[1], [1], [0], [0], [0, 0, 1, 0], [], []>} : vector<32x256xbf16>, vector<8x256xbf16>, vector<32x8xf32> -> vector<32x8xf32>
      %cst_47 = arith.constant 0.000000e+00 : f32
      %83 = vector.broadcast %cst_47 : f32 to vector<32x256xf32>
      %c0_i32_48 = arith.constant 0 : i32
      %84 = vector.broadcast %c0_i32_48 : i32 to vector<1x256xi32>
      %85 = arith.cmpi eq, %61, %84 : vector<1x256xi32>
      %86 = vector.extract_strided_slice %82 {offsets = [0, 0], sizes = [32, 1], strides = [1, 1]} : vector<32x8xf32> to vector<32x1xf32>
      %87 = vector.shape_cast %85 : vector<1x256xi1> to vector<1x256xi1>
      %88 = vector.broadcast %87 : vector<1x256xi1> to vector<32x256xi1>
      %89 = vector.shape_cast %86 : vector<32x1xf32> to vector<32x1xf32>
      %90 = vector.broadcast %89 : vector<32x1xf32> to vector<32x256xf32>
      %91 = arith.select %88, %90, %83 : vector<32x256xi1>, vector<32x256xf32>
      %c1_i32 = arith.constant 1 : i32
      %92 = vector.broadcast %c1_i32 : i32 to vector<1x256xi32>
      %93 = arith.cmpi eq, %61, %92 : vector<1x256xi32>
      %94 = vector.extract_strided_slice %82 {offsets = [0, 1], sizes = [32, 1], strides = [1, 1]} : vector<32x8xf32> to vector<32x1xf32>
      %95 = vector.shape_cast %93 : vector<1x256xi1> to vector<1x256xi1>
      %96 = vector.broadcast %95 : vector<1x256xi1> to vector<32x256xi1>
      %97 = vector.shape_cast %94 : vector<32x1xf32> to vector<32x1xf32>
      %98 = vector.broadcast %97 : vector<32x1xf32> to vector<32x256xf32>
      %99 = arith.select %96, %98, %91 : vector<32x256xi1>, vector<32x256xf32>
      %c2_i32 = arith.constant 2 : i32
      %100 = vector.broadcast %c2_i32 : i32 to vector<1x256xi32>
      %101 = arith.cmpi eq, %61, %100 : vector<1x256xi32>
      %102 = vector.extract_strided_slice %82 {offsets = [0, 2], sizes = [32, 1], strides = [1, 1]} : vector<32x8xf32> to vector<32x1xf32>
      %103 = vector.shape_cast %101 : vector<1x256xi1> to vector<1x256xi1>
      %104 = vector.broadcast %103 : vector<1x256xi1> to vector<32x256xi1>
      %105 = vector.shape_cast %102 : vector<32x1xf32> to vector<32x1xf32>
      %106 = vector.broadcast %105 : vector<32x1xf32> to vector<32x256xf32>
      %107 = arith.select %104, %106, %99 : vector<32x256xi1>, vector<32x256xf32>
      %c3_i32 = arith.constant 3 : i32
      %108 = vector.broadcast %c3_i32 : i32 to vector<1x256xi32>
      %109 = arith.cmpi eq, %61, %108 : vector<1x256xi32>
      %110 = vector.extract_strided_slice %82 {offsets = [0, 3], sizes = [32, 1], strides = [1, 1]} : vector<32x8xf32> to vector<32x1xf32>
      %111 = vector.shape_cast %109 : vector<1x256xi1> to vector<1x256xi1>
      %112 = vector.broadcast %111 : vector<1x256xi1> to vector<32x256xi1>
      %113 = vector.shape_cast %110 : vector<32x1xf32> to vector<32x1xf32>
      %114 = vector.broadcast %113 : vector<32x1xf32> to vector<32x256xf32>
      %115 = arith.select %112, %114, %107 : vector<32x256xi1>, vector<32x256xf32>
      %c4_i32 = arith.constant 4 : i32
      %116 = vector.broadcast %c4_i32 : i32 to vector<1x256xi32>
      %117 = arith.cmpi eq, %61, %116 : vector<1x256xi32>
      %118 = vector.extract_strided_slice %82 {offsets = [0, 4], sizes = [32, 1], strides = [1, 1]} : vector<32x8xf32> to vector<32x1xf32>
      %119 = vector.shape_cast %117 : vector<1x256xi1> to vector<1x256xi1>
      %120 = vector.broadcast %119 : vector<1x256xi1> to vector<32x256xi1>
      %121 = vector.shape_cast %118 : vector<32x1xf32> to vector<32x1xf32>
      %122 = vector.broadcast %121 : vector<32x1xf32> to vector<32x256xf32>
      %123 = arith.select %120, %122, %115 : vector<32x256xi1>, vector<32x256xf32>
      %c5_i32 = arith.constant 5 : i32
      %124 = vector.broadcast %c5_i32 : i32 to vector<1x256xi32>
      %125 = arith.cmpi eq, %61, %124 : vector<1x256xi32>
      %126 = vector.extract_strided_slice %82 {offsets = [0, 5], sizes = [32, 1], strides = [1, 1]} : vector<32x8xf32> to vector<32x1xf32>
      %127 = vector.shape_cast %125 : vector<1x256xi1> to vector<1x256xi1>
      %128 = vector.broadcast %127 : vector<1x256xi1> to vector<32x256xi1>
      %129 = vector.shape_cast %126 : vector<32x1xf32> to vector<32x1xf32>
      %130 = vector.broadcast %129 : vector<32x1xf32> to vector<32x256xf32>
      %131 = arith.select %128, %130, %123 : vector<32x256xi1>, vector<32x256xf32>
      %c6_i32 = arith.constant 6 : i32
      %132 = vector.broadcast %c6_i32 : i32 to vector<1x256xi32>
      %133 = arith.cmpi eq, %61, %132 : vector<1x256xi32>
      %134 = vector.extract_strided_slice %82 {offsets = [0, 6], sizes = [32, 1], strides = [1, 1]} : vector<32x8xf32> to vector<32x1xf32>
      %135 = vector.shape_cast %133 : vector<1x256xi1> to vector<1x256xi1>
      %136 = vector.broadcast %135 : vector<1x256xi1> to vector<32x256xi1>
      %137 = vector.shape_cast %134 : vector<32x1xf32> to vector<32x1xf32>
      %138 = vector.broadcast %137 : vector<32x1xf32> to vector<32x256xf32>
      %139 = arith.select %136, %138, %131 : vector<32x256xi1>, vector<32x256xf32>
      %c7_i32 = arith.constant 7 : i32
      %140 = vector.broadcast %c7_i32 : i32 to vector<1x256xi32>
      %141 = arith.cmpi eq, %61, %140 : vector<1x256xi32>
      %142 = vector.extract_strided_slice %82 {offsets = [0, 7], sizes = [32, 1], strides = [1, 1]} : vector<32x8xf32> to vector<32x1xf32>
      %143 = vector.shape_cast %141 : vector<1x256xi1> to vector<1x256xi1>
      %144 = vector.broadcast %143 : vector<1x256xi1> to vector<32x256xi1>
      %145 = vector.shape_cast %142 : vector<32x1xf32> to vector<32x1xf32>
      %146 = vector.broadcast %145 : vector<32x1xf32> to vector<32x256xf32>
      %147 = arith.select %144, %146, %139 : vector<32x256xi1>, vector<32x256xf32>
      %148 = arith.truncf %147 : vector<32x256xf32> to vector<32x256xbf16>
      %c0_49 = arith.constant 0 : index
      %c0_50 = arith.constant 0 : index
      %149 = vector.load %arg9[%c0_49, %c0_50] : memref<16x32xbf16, #tpu.memory_space<vmem>>, vector<16x32xbf16>
      %cst_51 = arith.constant dense<0.000000e+00> : vector<16x256xf32>
      %150 = tpu.matmul %149, %148, %cst_51 {dimension_numbers = #tpu.dot_dimension_numbers<[1], [0], [0], [1], [0, 0, 1, 1], [], []>} : vector<16x32xbf16>, vector<32x256xbf16>, vector<16x256xf32> -> vector<16x256xf32>
      %c0_52 = arith.constant 0 : index
      %c0_53 = arith.constant 0 : index
      %151 = vector.load %arg10[%c0_52, %c0_53] : memref<16x1xf32, #tpu.memory_space<vmem>>, vector<16x1xf32>
      %152 = vector.broadcast %151 : vector<16x1xf32> to vector<16x256xf32>
      %153 = arith.addf %150, %152 : vector<16x256xf32>
      %cst_54 = arith.constant 0.000000e+00 : f32
      %154 = vector.broadcast %cst_54 : f32 to vector<16x256xf32>
      %155 = arith.maximumf %153, %154 : vector<16x256xf32>
      %156 = arith.truncf %155 : vector<16x256xf32> to vector<16x256xbf16>
      %c0_55 = arith.constant 0 : index
      %c0_56 = arith.constant 0 : index
      %157 = vector.load %arg11[%c0_55, %c0_56] : memref<16x16xbf16, #tpu.memory_space<vmem>>, vector<16x16xbf16>
      %cst_57 = arith.constant dense<0.000000e+00> : vector<16x256xf32>
      %158 = tpu.matmul %157, %156, %cst_57 {dimension_numbers = #tpu.dot_dimension_numbers<[1], [0], [0], [1], [0, 0, 1, 1], [], []>} : vector<16x16xbf16>, vector<16x256xbf16>, vector<16x256xf32> -> vector<16x256xf32>
      %c0_58 = arith.constant 0 : index
      %c0_59 = arith.constant 0 : index
      %159 = vector.load %arg12[%c0_58, %c0_59] : memref<16x1xf32, #tpu.memory_space<vmem>>, vector<16x1xf32>
      %160 = vector.broadcast %159 : vector<16x1xf32> to vector<16x256xf32>
      %161 = arith.addf %158, %160 : vector<16x256xf32>
      %cst_60 = arith.constant 0.000000e+00 : f32
      %162 = vector.broadcast %cst_60 : f32 to vector<16x256xf32>
      %163 = arith.maximumf %161, %162 : vector<16x256xf32>
      %164 = arith.truncf %163 : vector<16x256xf32> to vector<16x256xbf16>
      %c0_61 = arith.constant 0 : index
      %c0_62 = arith.constant 0 : index
      %165 = vector.load %arg18[%c0_61, %c0_62] : memref<16x256xbf16, #tpu.memory_space<vmem>>, vector<16x256xbf16>
      tpu.vector_store %arg18[%c0_61, %c0_62], %164 {strides = array<i32>} : memref<16x256xbf16, #tpu.memory_space<vmem>>, vector<16x256xbf16>,
      %c0_63 = arith.constant 0 : index
      %c0_64 = arith.constant 0 : index
      %166 = vector.load %arg13[%c0_63, %c0_64] : memref<16x32xbf16, #tpu.memory_space<vmem>>, vector<16x32xbf16>
      %cst_65 = arith.constant dense<0.000000e+00> : vector<16x256xf32>
      %167 = tpu.matmul %166, %148, %cst_65 {dimension_numbers = #tpu.dot_dimension_numbers<[1], [0], [0], [1], [0, 0, 1, 1], [], []>} : vector<16x32xbf16>, vector<32x256xbf16>, vector<16x256xf32> -> vector<16x256xf32>
      %c0_66 = arith.constant 0 : index
      %c0_67 = arith.constant 0 : index
      %168 = vector.load %arg14[%c0_66, %c0_67] : memref<16x1xf32, #tpu.memory_space<vmem>>, vector<16x1xf32>
      %169 = vector.broadcast %168 : vector<16x1xf32> to vector<16x256xf32>
      %170 = arith.addf %167, %169 : vector<16x256xf32>
      %cst_68 = arith.constant 0.000000e+00 : f32
      %171 = vector.broadcast %cst_68 : f32 to vector<16x256xf32>
      %172 = arith.maximumf %170, %171 : vector<16x256xf32>
      %173 = arith.truncf %172 : vector<16x256xf32> to vector<16x256xbf16>
      %c0_69 = arith.constant 0 : index
      %c0_70 = arith.constant 0 : index
      %174 = vector.load %arg19[%c0_69, %c0_70] : memref<16x256xbf16, #tpu.memory_space<vmem>>, vector<16x256xbf16>
      tpu.vector_store %arg19[%c0_69, %c0_70], %173 {strides = array<i32>} : memref<16x256xbf16, #tpu.memory_space<vmem>>, vector<16x256xbf16>,
    } else {
    }
    %c0 = arith.constant 0 : index
    %c0_1 = arith.constant 0 : index
    %c0_2 = arith.constant 0 : index
    %3 = vector.load %arg3[%c0, %c0_1, %c0_2] : memref<1x32x128xbf16, #tpu.memory_space<vmem>>, vector<1x32x128xbf16>
    %4 = vector.shape_cast %3 : vector<1x32x128xbf16> to vector<32x128xbf16>
    %c0_3 = arith.constant 0 : index
    %c0_4 = arith.constant 0 : index
    %5 = vector.load %arg5[%c0_3, %c0_4] : memref<16x32xbf16, #tpu.memory_space<vmem>>, vector<16x32xbf16>
    %cst = arith.constant dense<0.000000e+00> : vector<16x128xf32>
    %6 = tpu.matmul %5, %4, %cst {dimension_numbers = #tpu.dot_dimension_numbers<[1], [0], [0], [1], [0, 0, 1, 1], [], []>} : vector<16x32xbf16>, vector<32x128xbf16>, vector<16x128xf32> -> vector<16x128xf32>
    %c0_5 = arith.constant 0 : index
    %c0_6 = arith.constant 0 : index
    %7 = vector.load %arg6[%c0_5, %c0_6] : memref<16x1xf32, #tpu.memory_space<vmem>>, vector<16x1xf32>
    %8 = vector.broadcast %7 : vector<16x1xf32> to vector<16x128xf32>
    %9 = arith.addf %6, %8 : vector<16x128xf32>
    %cst_7 = arith.constant 0.000000e+00 : f32
    %10 = vector.broadcast %cst_7 : f32 to vector<16x128xf32>
    %11 = arith.maximumf %9, %10 : vector<16x128xf32>
    %12 = arith.truncf %11 : vector<16x128xf32> to vector<16x128xbf16>
    %c0_8 = arith.constant 0 : index
    %c0_9 = arith.constant 0 : index
    %13 = vector.load %arg7[%c0_8, %c0_9] : memref<16x16xbf16, #tpu.memory_space<vmem>>, vector<16x16xbf16>
    %cst_10 = arith.constant dense<0.000000e+00> : vector<16x128xf32>
    %14 = tpu.matmul %13, %12, %cst_10 {dimension_numbers = #tpu.dot_dimension_numbers<[1], [0], [0], [1], [0, 0, 1, 1], [], []>} : vector<16x16xbf16>, vector<16x128xbf16>, vector<16x128xf32> -> vector<16x128xf32>
    %c0_11 = arith.constant 0 : index
    %c0_12 = arith.constant 0 : index
    %15 = vector.load %arg8[%c0_11, %c0_12] : memref<16x1xf32, #tpu.memory_space<vmem>>, vector<16x1xf32>
    %16 = vector.broadcast %15 : vector<16x1xf32> to vector<16x128xf32>
    %17 = arith.addf %14, %16 : vector<16x128xf32>
    %cst_13 = arith.constant 0.000000e+00 : f32
    %18 = vector.broadcast %cst_13 : f32 to vector<16x128xf32>
    %19 = arith.maximumf %17, %18 : vector<16x128xf32>
    %cst_14 = arith.constant 2.500000e-01 : f32
    %20 = vector.broadcast %cst_14 : f32 to vector<16x128xf32>
    %21 = arith.mulf %19, %20 : vector<16x128xf32>
    %22 = arith.truncf %21 : vector<16x128xf32> to vector<16x128xbf16>
    %c0_15 = arith.constant 0 : index
    %c0_16 = arith.constant 0 : index
    %23 = vector.load %arg18[%c0_15, %c0_16] : memref<16x256xbf16, #tpu.memory_space<vmem>>, vector<16x256xbf16>
    %cst_17 = arith.constant dense<0.000000e+00> : vector<128x256xf32>
    %24 = tpu.matmul %22, %23, %cst_17 {dimension_numbers = #tpu.dot_dimension_numbers<[0], [0], [1], [1], [0, 1, 1, 1], [], []>} : vector<16x128xbf16>, vector<16x256xbf16>, vector<128x256xf32> -> vector<128x256xf32>
    %cst_18 = arith.constant dense<0xFF800000> : vector<128xf32>
    %25 = vector.multi_reduction <maximumf>, %24, %cst_18 [1] : vector<128x256xf32> to vector<128xf32>
    %26 = vector.shape_cast %25 : vector<128xf32> to vector<128x1xf32>
    %27 = vector.broadcast %26 : vector<128x1xf32> to vector<128x256xf32>
    %28 = arith.subf %24, %27 : vector<128x256xf32>
    %29 = math.exp %28 : vector<128x256xf32>
    %cst_19 = arith.constant dense<0.000000e+00> : vector<128xf32>
    %30 = vector.multi_reduction <add>, %29, %cst_19 [1] : vector<128x256xf32> to vector<128xf32>
    %31 = vector.shape_cast %30 : vector<128xf32> to vector<128x1xf32>
    %32 = tpu.reciprocal %31 {approx = true} : vector<128x1xf32> -> vector<128x1xf32>
    %33 = vector.broadcast %32 : vector<128x1xf32> to vector<128x256xf32>
    %34 = arith.mulf %29, %33 : vector<128x256xf32>
    %35 = arith.truncf %34 : vector<128x256xf32> to vector<128x256xbf16>
    %c0_20 = arith.constant 0 : index
    %c0_21 = arith.constant 0 : index
    %36 = vector.load %arg19[%c0_20, %c0_21] : memref<16x256xbf16, #tpu.memory_space<vmem>>, vector<16x256xbf16>
    %cst_22 = arith.constant dense<0.000000e+00> : vector<16x128xf32>
    %37 = tpu.matmul %36, %35, %cst_22 {dimension_numbers = #tpu.dot_dimension_numbers<[1], [1], [0], [0], [0, 0, 1, 0], [], []>} : vector<16x256xbf16>, vector<128x256xbf16>, vector<16x128xf32> -> vector<16x128xf32>
    %38 = arith.truncf %37 : vector<16x128xf32> to vector<16x128xbf16>
    %c0_23 = arith.constant 0 : index
    %c0_24 = arith.constant 0 : index
    %39 = vector.load %arg15[%c0_23, %c0_24] : memref<32x16xbf16, #tpu.memory_space<vmem>>, vector<32x16xbf16>
    %cst_25 = arith.constant dense<0.000000e+00> : vector<32x128xf32>
    %40 = tpu.matmul %39, %38, %cst_25 {dimension_numbers = #tpu.dot_dimension_numbers<[1], [0], [0], [1], [0, 0, 1, 1], [], []>} : vector<32x16xbf16>, vector<16x128xbf16>, vector<32x128xf32> -> vector<32x128xf32>
    %c0_26 = arith.constant 0 : index
    %c0_27 = arith.constant 0 : index
    %41 = vector.load %arg16[%c0_26, %c0_27] : memref<32x1xf32, #tpu.memory_space<vmem>>, vector<32x1xf32>
    %42 = vector.broadcast %41 : vector<32x1xf32> to vector<32x128xf32>
    %43 = arith.addf %40, %42 : vector<32x128xf32>
    %cst_28 = arith.constant 0.000000e+00 : f32
    %44 = vector.broadcast %cst_28 : f32 to vector<32x128xf32>
    %45 = arith.maximumf %43, %44 : vector<32x128xf32>
    %c0_29 = arith.constant 0 : index
    %c0_30 = arith.constant 0 : index
    %c0_31 = arith.constant 0 : index
    %46 = vector.load %arg17[%c0_29, %c0_30, %c0_31] : memref<1x32x128xf32, #tpu.memory_space<vmem>>, vector<1x32x128xf32>
    %47 = vector.shape_cast %46 : vector<1x32x128xf32> to vector<32x128xf32>
    %48 = vector.shape_cast %45 : vector<32x128xf32> to vector<1x32x128xf32>
    tpu.vector_store %arg17[%c0_29, %c0_30, %c0_31], %48 {strides = array<i32>} : memref<1x32x128xf32, #tpu.memory_space<vmem>>, vector<1x32x128xf32>,
    return
  }
  func.func @transform_0(%arg0: i32, %arg1: i32) -> (i32, i32, i32) {
    %c0_i32 = arith.constant 0 : i32
    %c0_i32_0 = arith.constant 0 : i32
    %c0_i32_1 = arith.constant 0 : i32
    return %arg0, %c0_i32, %c0_i32_0 : i32, i32, i32
  }
  func.func @transform_1(%arg0: i32, %arg1: i32) -> (i32, i32, i32) {
    %c0_i32 = arith.constant 0 : i32
    %c0_i32_0 = arith.constant 0 : i32
    return %arg0, %c0_i32, %arg1 : i32, i32, i32
  }
  func.func @transform_2(%arg0: i32, %arg1: i32) -> (i32, i32, i32) {
    %c0_i32 = arith.constant 0 : i32
    %c0_i32_0 = arith.constant 0 : i32
    %c0_i32_1 = arith.constant 0 : i32
    return %arg0, %c0_i32, %c0_i32_0 : i32, i32, i32
  }
  func.func @transform_3(%arg0: i32, %arg1: i32) -> (i32, i32) {
    %c0_i32 = arith.constant 0 : i32
    %c0_i32_0 = arith.constant 0 : i32
    %c0_i32_1 = arith.constant 0 : i32
    return %c0_i32, %c0_i32_0 : i32, i32
  }
  func.func @transform_4(%arg0: i32, %arg1: i32) -> (i32, i32) {
    %c0_i32 = arith.constant 0 : i32
    %c0_i32_0 = arith.constant 0 : i32
    %c0_i32_1 = arith.constant 0 : i32
    return %c0_i32, %c0_i32_0 : i32, i32
  }
  func.func @transform_5(%arg0: i32, %arg1: i32) -> (i32, i32) {
    %c0_i32 = arith.constant 0 : i32
    %c0_i32_0 = arith.constant 0 : i32
    %c0_i32_1 = arith.constant 0 : i32
    return %c0_i32, %c0_i32_0 : i32, i32
  }
  func.func @transform_6(%arg0: i32, %arg1: i32) -> (i32, i32) {
    %c0_i32 = arith.constant 0 : i32
    %c0_i32_0 = arith.constant 0 : i32
    %c0_i32_1 = arith.constant 0 : i32
    return %c0_i32, %c0_i32_0 : i32, i32
  }
  func.func @transform_7(%arg0: i32, %arg1: i32) -> (i32, i32) {
    %c0_i32 = arith.constant 0 : i32
    %c0_i32_0 = arith.constant 0 : i32
    %c0_i32_1 = arith.constant 0 : i32
    return %c0_i32, %c0_i32_0 : i32, i32
  }
  func.func @transform_8(%arg0: i32, %arg1: i32) -> (i32, i32) {
    %c0_i32 = arith.constant 0 : i32
    %c0_i32_0 = arith.constant 0 : i32
    %c0_i32_1 = arith.constant 0 : i32
    return %c0_i32, %c0_i32_0 : i32, i32
  }
  func.func @transform_9(%arg0: i32, %arg1: i32) -> (i32, i32) {
    %c0_i32 = arith.constant 0 : i32
    %c0_i32_0 = arith.constant 0 : i32
    %c0_i32_1 = arith.constant 0 : i32
    return %c0_i32, %c0_i32_0 : i32, i32
  }
  func.func @transform_10(%arg0: i32, %arg1: i32) -> (i32, i32) {
    %c0_i32 = arith.constant 0 : i32
    %c0_i32_0 = arith.constant 0 : i32
    %c0_i32_1 = arith.constant 0 : i32
    return %c0_i32, %c0_i32_0 : i32, i32
  }
  func.func @transform_11(%arg0: i32, %arg1: i32) -> (i32, i32) {
    %c0_i32 = arith.constant 0 : i32
    %c0_i32_0 = arith.constant 0 : i32
    %c0_i32_1 = arith.constant 0 : i32
    return %c0_i32, %c0_i32_0 : i32, i32
  }
  func.func @transform_12(%arg0: i32, %arg1: i32) -> (i32, i32) {
    %c0_i32 = arith.constant 0 : i32
    %c0_i32_0 = arith.constant 0 : i32
    %c0_i32_1 = arith.constant 0 : i32
    return %c0_i32, %c0_i32_0 : i32, i32
  }
  func.func @transform_13(%arg0: i32, %arg1: i32) -> (i32, i32) {
    %c0_i32 = arith.constant 0 : i32
    %c0_i32_0 = arith.constant 0 : i32
    %c0_i32_1 = arith.constant 0 : i32
    return %c0_i32, %c0_i32_0 : i32, i32
  }
  func.func @transform_14(%arg0: i32, %arg1: i32) -> (i32, i32) {
    %c0_i32 = arith.constant 0 : i32
    %c0_i32_0 = arith.constant 0 : i32
    %c0_i32_1 = arith.constant 0 : i32
    return %c0_i32, %c0_i32_0 : i32, i32
  }
  func.func @transform_15(%arg0: i32, %arg1: i32) -> (i32, i32, i32) {
    %c0_i32 = arith.constant 0 : i32
    %c0_i32_0 = arith.constant 0 : i32
    return %arg0, %c0_i32, %arg1 : i32, i32, i32
  }
}

</mosaic_0001>

<llo_original>
// kernel: tpu_custom_call.1
$region0: #{tpu_custom_call.1}
  #allocation0 [shape = 'u32[]', space=smem, size = 0x4, offset = 0x4, fixed_abs, tag = 'smem constant byte address 0x4 - core index']
  #allocation1 [shape = 'u32[72,128]{1,0:T(1,128)}', space=vmem, size = 0x9000, scoped, tag = 'internal scratch']
  #allocation2 [shape = 'bf16[16,256]{1,0:T(8,128)(2,1)}', space=vmem, size = 0x2000, scoped, tag = 'scratch operand']
  #allocation3 [shape = 'bf16[16,256]{1,0:T(8,128)(2,1)}', space=vmem, size = 0x2000, scoped, tag = 'scratch operand']
  %s0 = inlined_call_operand.hbm [shape: bf16[2,32,256], index: 0, kind: input, shape index: {}]
  %s1 = inlined_call_operand.hbm [shape: bf16[2,32,256], index: 1, kind: input, shape index: {}]
  %s2 = inlined_call_operand.vmem [shape: f32[2,8,256], index: 2, kind: input, shape index: {}]
  %s3 = inlined_call_operand.vmem [shape: bf16[16,32], index: 3, kind: input, shape index: {}]
  %s4 = inlined_call_operand.vmem [shape: f32[16,1], index: 4, kind: input, shape index: {}]
  %s5 = inlined_call_operand.vmem [shape: bf16[16,16], index: 5, kind: input, shape index: {}]
  %s6 = inlined_call_operand.vmem [shape: f32[16,1], index: 6, kind: input, shape index: {}]
  %s7 = inlined_call_operand.vmem [shape: bf16[16,32], index: 7, kind: input, shape index: {}]
  %s8 = inlined_call_operand.vmem [shape: f32[16,1], index: 8, kind: input, shape index: {}]
  %s9 = inlined_call_operand.vmem [shape: bf16[16,16], index: 9, kind: input, shape index: {}]
  %s10 = inlined_call_operand.vmem [shape: f32[16,1], index: 10, kind: input, shape index: {}]
  %s11 = inlined_call_operand.vmem [shape: bf16[16,32], index: 11, kind: input, shape index: {}]
  %s12 = inlined_call_operand.vmem [shape: f32[16,1], index: 12, kind: input, shape index: {}]
  %s13 = inlined_call_operand.vmem [shape: bf16[32,16], index: 13, kind: input, shape index: {}]
  %s14 = inlined_call_operand.vmem [shape: f32[32,1], index: 14, kind: input, shape index: {}]
  %s15 = inlined_call_operand.hbm [shape: f32[2,32,256], index: 15, kind: output, shape index: {}]
  %s16 = sld [smem:[#allocation0]]
  $region105: #{tpu_custom_call.1} parent=0
    _
  %s18 = ssub.s32 1, %s16
  %s19 = scalar_select 0, %s18, %s16
  $region1: #{tpu_custom_call.1} parent=0
    #allocation4 [shape = 'u8[32768]{0}', space=vmem, size = 0x8000, scoped, tag = 'input window, operand 0']
    #allocation5 [shape = 's32[2]{0}', space=sflag, size = 0x8, scoped, tag = 'scoped memory for tpu_custom_call.1']
    #allocation6 [shape = 's32[2]{0}', space=sflag, size = 0x8, scoped, tag = 'scoped memory for tpu_custom_call.1']
    #allocation7 [shape = 'u8[16384]{0}', space=vmem, size = 0x4000, scoped, tag = 'input window, operand 1']
    #allocation8 [shape = 's32[2]{0}', space=sflag, size = 0x8, scoped, tag = 'scoped memory for tpu_custom_call.1']
    #allocation9 [shape = 'u8[32768]{0}', space=vmem, size = 0x8000, scoped, tag = 'output window, operand 0']
    %20 = vsyncpa [#allocation5], 0
    %s21 = scalar_lea.sflag [#allocation5], 1
    %22 = vsyncpa %s21, 0
    %23 = vsyncpa [#allocation8], 0
    %s24 = scalar_lea.sflag [#allocation8], 1
    %25 = vsyncpa %s24, 0
    %26 = vsyncpa [#allocation6], 0
    %s27 = scalar_lea.sflag [#allocation6], 1
    %28 = vsyncpa %s27, 0
    loop: start=0, step=1, limit=6
    $region2: #{tpu_custom_call.1} parent=1 // loop_pre_header
      _
    $region3: #{tpu_custom_call.1} parent=1 // loop_header
      %s30 = sphi 0, %s34
      %p31 = scmp.ge.s32.totalorder %s30, 6
      %s37 = sphi 0, %s49
      %s38 = sphi 0, %s45
      %s39 = sphi 0, %s37
      %s40 = sphi 0, %s38
      %s41 = sphi 0, %s39
      %s42 = sphi 0, %s40
      %s52 = sphi 0, %s54
      %s55 = sphi 0, %s52
      %s56 = sphi 0, %s55
      %s72 = sphi 0, %s56
      %s80 = sphi 0, %s82
      %s83 = sphi 0, %s80
      %s84 = sphi 0, %s83
      %s100 = sphi 0, %s84
      %s106 = sphi 0, %s108
      %s109 = sphi 0, %s106
      %s110 = sphi 0, %s109
      %s126 = sphi 0, %s110
      %s130 = sphi 0, %s130
      %s132 = sphi 0, %s130
      %s133 = sphi 0, %s132
      %s147 = sphi 0, %s133
      %s151 = sphi 0, %s151
      %s153 = sphi 0, %s151
      %s154 = sphi 0, %s153
      %s168 = sphi 0, %s154
      %s172 = sphi 0, %s172
      %s174 = sphi 0, %s172
      %s175 = sphi 0, %s174
      %s189 = sphi 0, %s175
      %s193 = sphi 0, %s193
      %s195 = sphi 0, %s193
      %s196 = sphi 0, %s195
      %s210 = sphi 0, %s196
      %s214 = sphi 0, %s214
      %s216 = sphi 0, %s214
      %s217 = sphi 0, %s216
      %s231 = sphi 0, %s217
      %s235 = sphi 0, %s235
      %s237 = sphi 0, %s235
      %s238 = sphi 0, %s237
      %s252 = sphi 0, %s238
      %s256 = sphi 0, %s256
      %s258 = sphi 0, %s256
      %s259 = sphi 0, %s258
      %s273 = sphi 0, %s259
      %s277 = sphi 0, %s277
      %s279 = sphi 0, %s277
      %s280 = sphi 0, %s279
      %s294 = sphi 0, %s280
      %s298 = sphi 0, %s298
      %s300 = sphi 0, %s298
      %s301 = sphi 0, %s300
      %s315 = sphi 0, %s301
      %s319 = sphi 0, %s319
      %s321 = sphi 0, %s319
      %s322 = sphi 0, %s321
      %s336 = sphi 0, %s322
      %s340 = sphi 0, %s340
      %s342 = sphi 0, %s340
      %s343 = sphi 0, %s342
      %s357 = sphi 0, %s343
      %s361 = sphi 0, %s361
      %s363 = sphi 0, %s361
      %s364 = sphi 0, %s363
      %s378 = sphi 0, %s364
      %s386 = sphi 0, %s388
      %s389 = sphi 0, %s386
      %s390 = sphi 0, %s389
      %s406 = sphi 0, %s390
    $region4: #{tpu_custom_call.1} parent=1 // loop_header_branch
      %33 = sbr.rel (%p31) target = $region8
    $region5: #{tpu_custom_call.1} parent=1 // loop_body
      %s35 = ssub.s32 %s30, 1
      %s36 = ssub.s32 %s30, 2
      %s43 = sadd.s32 1, %s38
      %p44 = scmp.ge.s32.totalorder %s43, 2
      %s45 = scalar_select %p44, 0, %s43
      %s46 = sadd.s32 1, %s37
      %s47 = scalar_select %p44, %s46, %s37
      %p48 = scmp.ge.s32.totalorder %s47, 2
      %s49 = scalar_select %p48, 0, %s47
      %s50 = ssub.s32 %s37, %s49
      %p51 = scmp.eq.s32.totalorder %s50, 0
      %s53 = sadd.s32 %s52, 1
      %s54 = scalar_select %p51, %s52, %s53
      %p57 = pneg %p51
      %p58 = scmp.eq.s32.totalorder %s30, 3
      %p59 = por %p57, %p58
      %p60 = scmp.ne.s32.totalorder %s52, %s55
      %p61 = scmp.eq.s32.totalorder %s30, 0
      %p62 = por %p60, %p61
      %p63 = scmp.ne.s32.totalorder %s52, %s55
      %p64 = scmp.eq.s32.totalorder %s35, 3
      %p65 = por %p63, %p64
      %p66 = scmp.ne.s32.totalorder %s55, %s56
      %p67 = scmp.eq.s32.totalorder %s35, 0
      %p68 = por %p66, %p67
      %p69 = scmp.ne.s32.totalorder %s55, %s56
      %p70 = scmp.eq.s32.totalorder %s36, 3
      %p71 = por %p69, %p70
      %p73 = scmp.ne.s32.totalorder %s56, %s72
      %p74 = scmp.eq.s32.totalorder %s36, 0
      %p75 = por %p73, %p74
      %s76 = ssub.s32 %s37, %s49
      %s77 = ssub.s32 %s38, %s45
      %s78 = sor.u32 %s76, %s77
      %p79 = scmp.eq.s32.totalorder %s78, 0
      %s81 = sadd.s32 %s80, 1
      %s82 = scalar_select %p79, %s80, %s81
      %p85 = pneg %p79
      %p86 = scmp.eq.s32.totalorder %s30, 3
      %p87 = por %p85, %p86
      %p88 = scmp.ne.s32.totalorder %s80, %s83
      %p89 = scmp.eq.s32.totalorder %s30, 0
      %p90 = por %p88, %p89
      %p91 = scmp.ne.s32.totalorder %s80, %s83
      %p92 = scmp.eq.s32.totalorder %s35, 3
      %p93 = por %p91, %p92
      %p94 = scmp.ne.s32.totalorder %s83, %s84
      %p95 = scmp.eq.s32.totalorder %s35, 0
      %p96 = por %p94, %p95
      %p97 = scmp.ne.s32.totalorder %s83, %s84
      %p98 = scmp.eq.s32.totalorder %s36, 3
      %p99 = por %p97, %p98
      %p101 = scmp.ne.s32.totalorder %s84, %s100
      %p102 = scmp.eq.s32.totalorder %s36, 0
      %p103 = por %p101, %p102
      %s104 = ssub.s32 %s37, %s49
      %p105 = scmp.eq.s32.totalorder %s104, 0
      %s107 = sadd.s32 %s106, 1
      %s108 = scalar_select %p105, %s106, %s107
      %p111 = pneg %p105
      %p112 = scmp.eq.s32.totalorder %s30, 3
      %p113 = por %p111, %p112
      %p114 = scmp.ne.s32.totalorder %s106, %s109
      %p115 = scmp.eq.s32.totalorder %s30, 0
      %p116 = por %p114, %p115
      %p117 = scmp.ne.s32.totalorder %s106, %s109
      %p118 = scmp.eq.s32.totalorder %s35, 3
      %p119 = por %p117, %p118
      %p120 = scmp.ne.s32.totalorder %s109, %s110
      %p121 = scmp.eq.s32.totalorder %s35, 0
      %p122 = por %p120, %p121
      %p123 = scmp.ne.s32.totalorder %s109, %s110
      %p124 = scmp.eq.s32.totalorder %s36, 3
      %p125 = por %p123, %p124
      %p127 = scmp.ne.s32.totalorder %s110, %s126
      %p128 = scmp.eq.s32.totalorder %s36, 0
      %p129 = por %p127, %p128
      %s131 = sadd.s32 %s130, 1
      %p134 = scmp.eq.s32.totalorder %s30, 3
      %p135 = scmp.ne.s32.totalorder %s130, %s132
      %p136 = scmp.eq.s32.totalorder %s30, 0
      %p137 = por %p135, %p136
      %p138 = scmp.ne.s32.totalorder %s130, %s132
      %p139 = scmp.eq.s32.totalorder %s35, 3
      %p140 = por %p138, %p139
      %p141 = scmp.ne.s32.totalorder %s132, %s133
      %p142 = scmp.eq.s32.totalorder %s35, 0
      %p143 = por %p141, %p142
      %p144 = scmp.ne.s32.totalorder %s132, %s133
      %p145 = scmp.eq.s32.totalorder %s36, 3
      %p146 = por %p144, %p145
      %p148 = scmp.ne.s32.totalorder %s133, %s147
      %p149 = scmp.eq.s32.totalorder %s36, 0
      %p150 = por %p148, %p149
      %s152 = sadd.s32 %s151, 1
      %p155 = scmp.eq.s32.totalorder %s30, 3
      %p156 = scmp.ne.s32.totalorder %s151, %s153
      %p157 = scmp.eq.s32.totalorder %s30, 0
      %p158 = por %p156, %p157
      %p159 = scmp.ne.s32.totalorder %s151, %s153
      %p160 = scmp.eq.s32.totalorder %s35, 3
      %p161 = por %p159, %p160
      %p162 = scmp.ne.s32.totalorder %s153, %s154
      %p163 = scmp.eq.s32.totalorder %s35, 0
      %p164 = por %p162, %p163
      %p165 = scmp.ne.s32.totalorder %s153, %s154
      %p166 = scmp.eq.s32.totalorder %s36, 3
      %p167 = por %p165, %p166
      %p169 = scmp.ne.s32.totalorder %s154, %s168
      %p170 = scmp.eq.s32.totalorder %s36, 0
      %p171 = por %p169, %p170
      %s173 = sadd.s32 %s172, 1
      %p176 = scmp.eq.s32.totalorder %s30, 3
      %p177 = scmp.ne.s32.totalorder %s172, %s174
      %p178 = scmp.eq.s32.totalorder %s30, 0
      %p179 = por %p177, %p178
      %p180 = scmp.ne.s32.totalorder %s172, %s174
      %p181 = scmp.eq.s32.totalorder %s35, 3
      %p182 = por %p180, %p181
      %p183 = scmp.ne.s32.totalorder %s174, %s175
      %p184 = scmp.eq.s32.totalorder %s35, 0
      %p185 = por %p183, %p184
      %p186 = scmp.ne.s32.totalorder %s174, %s175
      %p187 = scmp.eq.s32.totalorder %s36, 3
      %p188 = por %p186, %p187
      %p190 = scmp.ne.s32.totalorder %s175, %s189
      %p191 = scmp.eq.s32.totalorder %s36, 0
      %p192 = por %p190, %p191
      %s194 = sadd.s32 %s193, 1
      %p197 = scmp.eq.s32.totalorder %s30, 3
      %p198 = scmp.ne.s32.totalorder %s193, %s195
      %p199 = scmp.eq.s32.totalorder %s30, 0
      %p200 = por %p198, %p199
      %p201 = scmp.ne.s32.totalorder %s193, %s195
      %p202 = scmp.eq.s32.totalorder %s35, 3
      %p203 = por %p201, %p202
      %p204 = scmp.ne.s32.totalorder %s195, %s196
      %p205 = scmp.eq.s32.totalorder %s35, 0
      %p206 = por %p204, %p205
      %p207 = scmp.ne.s32.totalorder %s195, %s196
      %p208 = scmp.eq.s32.totalorder %s36, 3
      %p209 = por %p207, %p208
      %p211 = scmp.ne.s32.totalorder %s196, %s210
      %p212 = scmp.eq.s32.totalorder %s36, 0
      %p213 = por %p211, %p212
      %s215 = sadd.s32 %s214, 1
      %p218 = scmp.eq.s32.totalorder %s30, 3
      %p219 = scmp.ne.s32.totalorder %s214, %s216
      %p220 = scmp.eq.s32.totalorder %s30, 0
      %p221 = por %p219, %p220
      %p222 = scmp.ne.s32.totalorder %s214, %s216
      %p223 = scmp.eq.s32.totalorder %s35, 3
      %p224 = por %p222, %p223
      %p225 = scmp.ne.s32.totalorder %s216, %s217
      %p226 = scmp.eq.s32.totalorder %s35, 0
      %p227 = por %p225, %p226
      %p228 = scmp.ne.s32.totalorder %s216, %s217
      %p229 = scmp.eq.s32.totalorder %s36, 3
      %p230 = por %p228, %p229
      %p232 = scmp.ne.s32.totalorder %s217, %s231
      %p233 = scmp.eq.s32.totalorder %s36, 0
      %p234 = por %p232, %p233
      %s236 = sadd.s32 %s235, 1
      %p239 = scmp.eq.s32.totalorder %s30, 3
      %p240 = scmp.ne.s32.totalorder %s235, %s237
      %p241 = scmp.eq.s32.totalorder %s30, 0
      %p242 = por %p240, %p241
      %p243 = scmp.ne.s32.totalorder %s235, %s237
      %p244 = scmp.eq.s32.totalorder %s35, 3
      %p245 = por %p243, %p244
      %p246 = scmp.ne.s32.totalorder %s237, %s238
      %p247 = scmp.eq.s32.totalorder %s35, 0
      %p248 = por %p246, %p247
      %p249 = scmp.ne.s32.totalorder %s237, %s238
      %p250 = scmp.eq.s32.totalorder %s36, 3
      %p251 = por %p249, %p250
      %p253 = scmp.ne.s32.totalorder %s238, %s252
      %p254 = scmp.eq.s32.totalorder %s36, 0
      %p255 = por %p253, %p254
      %s257 = sadd.s32 %s256, 1
      %p260 = scmp.eq.s32.totalorder %s30, 3
      %p261 = scmp.ne.s32.totalorder %s256, %s258
      %p262 = scmp.eq.s32.totalorder %s30, 0
      %p263 = por %p261, %p262
      %p264 = scmp.ne.s32.totalorder %s256, %s258
      %p265 = scmp.eq.s32.totalorder %s35, 3
      %p266 = por %p264, %p265
      %p267 = scmp.ne.s32.totalorder %s258, %s259
      %p268 = scmp.eq.s32.totalorder %s35, 0
      %p269 = por %p267, %p268
      %p270 = scmp.ne.s32.totalorder %s258, %s259
      %p271 = scmp.eq.s32.totalorder %s36, 3
      %p272 = por %p270, %p271
      %p274 = scmp.ne.s32.totalorder %s259, %s273
      %p275 = scmp.eq.s32.totalorder %s36, 0
      %p276 = por %p274, %p275
      %s278 = sadd.s32 %s277, 1
      %p281 = scmp.eq.s32.totalorder %s30, 3
      %p282 = scmp.ne.s32.totalorder %s277, %s279
      %p283 = scmp.eq.s32.totalorder %s30, 0
      %p284 = por %p282, %p283
      %p285 = scmp.ne.s32.totalorder %s277, %s279
      %p286 = scmp.eq.s32.totalorder %s35, 3
      %p287 = por %p285, %p286
      %p288 = scmp.ne.s32.totalorder %s279, %s280
      %p289 = scmp.eq.s32.totalorder %s35, 0
      %p290 = por %p288, %p289
      %p291 = scmp.ne.s32.totalorder %s279, %s280
      %p292 = scmp.eq.s32.totalorder %s36, 3
      %p293 = por %p291, %p292
      %p295 = scmp.ne.s32.totalorder %s280, %s294
      %p296 = scmp.eq.s32.totalorder %s36, 0
      %p297 = por %p295, %p296
      %s299 = sadd.s32 %s298, 1
      %p302 = scmp.eq.s32.totalorder %s30, 3
      %p303 = scmp.ne.s32.totalorder %s298, %s300
      %p304 = scmp.eq.s32.totalorder %s30, 0
      %p305 = por %p303, %p304
      %p306 = scmp.ne.s32.totalorder %s298, %s300
      %p307 = scmp.eq.s32.totalorder %s35, 3
      %p308 = por %p306, %p307
      %p309 = scmp.ne.s32.totalorder %s300, %s301
      %p310 = scmp.eq.s32.totalorder %s35, 0
      %p311 = por %p309, %p310
      %p312 = scmp.ne.s32.totalorder %s300, %s301
      %p313 = scmp.eq.s32.totalorder %s36, 3
      %p314 = por %p312, %p313
      %p316 = scmp.ne.s32.totalorder %s301, %s315
      %p317 = scmp.eq.s32.totalorder %s36, 0
      %p318 = por %p316, %p317
      %s320 = sadd.s32 %s319, 1
      %p323 = scmp.eq.s32.totalorder %s30, 3
      %p324 = scmp.ne.s32.totalorder %s319, %s321
      %p325 = scmp.eq.s32.totalorder %s30, 0
      %p326 = por %p324, %p325
      %p327 = scmp.ne.s32.totalorder %s319, %s321
      %p328 = scmp.eq.s32.totalorder %s35, 3
      %p329 = por %p327, %p328
      %p330 = scmp.ne.s32.totalorder %s321, %s322
      %p331 = scmp.eq.s32.totalorder %s35, 0
      %p332 = por %p330, %p331
      %p333 = scmp.ne.s32.totalorder %s321, %s322
      %p334 = scmp.eq.s32.totalorder %s36, 3
      %p335 = por %p333, %p334
      %p337 = scmp.ne.s32.totalorder %s322, %s336
      %p338 = scmp.eq.s32.totalorder %s36, 0
      %p339 = por %p337, %p338
      %s341 = sadd.s32 %s340, 1
      %p344 = scmp.eq.s32.totalorder %s30, 3
      %p345 = scmp.ne.s32.totalorder %s340, %s342
      %p346 = scmp.eq.s32.totalorder %s30, 0
      %p347 = por %p345, %p346
      %p348 = scmp.ne.s32.totalorder %s340, %s342
      %p349 = scmp.eq.s32.totalorder %s35, 3
      %p350 = por %p348, %p349
      %p351 = scmp.ne.s32.totalorder %s342, %s343
      %p352 = scmp.eq.s32.totalorder %s35, 0
      %p353 = por %p351, %p352
      %p354 = scmp.ne.s32.totalorder %s342, %s343
      %p355 = scmp.eq.s32.totalorder %s36, 3
      %p356 = por %p354, %p355
      %p358 = scmp.ne.s32.totalorder %s343, %s357
      %p359 = scmp.eq.s32.totalorder %s36, 0
      %p360 = por %p358, %p359
      %s362 = sadd.s32 %s361, 1
      %p365 = scmp.eq.s32.totalorder %s30, 3
      %p366 = scmp.ne.s32.totalorder %s361, %s363
      %p367 = scmp.eq.s32.totalorder %s30, 0
      %p368 = por %p366, %p367
      %p369 = scmp.ne.s32.totalorder %s361, %s363
      %p370 = scmp.eq.s32.totalorder %s35, 3
      %p371 = por %p369, %p370
      %p372 = scmp.ne.s32.totalorder %s363, %s364
      %p373 = scmp.eq.s32.totalorder %s35, 0
      %p374 = por %p372, %p373
      %p375 = scmp.ne.s32.totalorder %s363, %s364
      %p376 = scmp.eq.s32.totalorder %s36, 3
      %p377 = por %p375, %p376
      %p379 = scmp.ne.s32.totalorder %s364, %s378
      %p380 = scmp.eq.s32.totalorder %s36, 0
      %p381 = por %p379, %p380
      %s382 = ssub.s32 %s37, %s49
      %s383 = ssub.s32 %s38, %s45
      %s384 = sor.u32 %s382, %s383
      %p385 = scmp.eq.s32.totalorder %s384, 0
      %s387 = sadd.s32 %s386, 1
      %s388 = scalar_select %p385, %s386, %s387
      %p391 = pneg %p385
      %p392 = scmp.eq.s32.totalorder %s30, 3
      %p393 = por %p391, %p392
      %p394 = scmp.ne.s32.totalorder %s386, %s389
      %p395 = scmp.eq.s32.totalorder %s30, 0
      %p396 = por %p394, %p395
      %p397 = scmp.ne.s32.totalorder %s386, %s389
      %p398 = scmp.eq.s32.totalorder %s35, 3
      %p399 = por %p397, %p398
      %p400 = scmp.ne.s32.totalorder %s389, %s390
      %p401 = scmp.eq.s32.totalorder %s35, 0
      %p402 = por %p400, %p401
      %p403 = scmp.ne.s32.totalorder %s389, %s390
      %p404 = scmp.eq.s32.totalorder %s36, 3
      %p405 = por %p403, %p404
      %p407 = scmp.ne.s32.totalorder %s390, %s406
      %p408 = scmp.eq.s32.totalorder %s36, 0
      %p409 = por %p407, %p408
      %p410 = scmp.le.s32.totalorder 1, %s30
      %p411 = scmp.lt.s32.totalorder %s30, 5
      %p412 = pnand %p410, %p411
      %p413 = pneg %p412
      // Predicated region
      $region9: #{tpu_custom_call.1} parent=5 // pred_check
        _
      $region10: #{tpu_custom_call.1} parent=5 // pred_check_branch
        %415 = sbr.rel (%p412) target = $region12
      $region11: #{tpu_custom_call.1} parent=5 // pred_region
        %s416 = ssub.s32 %s30, 1
        // Predicated region
        $region13: #{tpu_custom_call.1} parent=11 // pred_check
          %p417 = pneg %p143
        $region14: #{tpu_custom_call.1} parent=11 // pred_check_branch
          %419 = sbr.rel (%p417) target = $region16
        $region15: #{tpu_custom_call.1} parent=11 // pred_region
          _
        $region16: #{tpu_custom_call.1} parent=11 // pred_fallthru
          _
        // Predicated region
        $region17: #{tpu_custom_call.1} parent=11 // pred_check
          %p420 = pneg %p164
        $region18: #{tpu_custom_call.1} parent=11 // pred_check_branch
          %422 = sbr.rel (%p420) target = $region20
        $region19: #{tpu_custom_call.1} parent=11 // pred_region
          _
        $region20: #{tpu_custom_call.1} parent=11 // pred_fallthru
          _
        // Predicated region
        $region21: #{tpu_custom_call.1} parent=11 // pred_check
          %p423 = pneg %p185
        $region22: #{tpu_custom_call.1} parent=11 // pred_check_branch
          %425 = sbr.rel (%p423) target = $region24
        $region23: #{tpu_custom_call.1} parent=11 // pred_region
          _
        $region24: #{tpu_custom_call.1} parent=11 // pred_fallthru
          _
        // Predicated region
        $region25: #{tpu_custom_call.1} parent=11 // pred_check
          %p426 = pneg %p206
        $region26: #{tpu_custom_call.1} parent=11 // pred_check_branch
          %428 = sbr.rel (%p426) target = $region28
        $region27: #{tpu_custom_call.1} parent=11 // pred_region
          _
        $region28: #{tpu_custom_call.1} parent=11 // pred_fallthru
          _
        // Predicated region
        $region29: #{tpu_custom_call.1} parent=11 // pred_check
          %p429 = pneg %p227
        $region30: #{tpu_custom_call.1} parent=11 // pred_check_branch
          %431 = sbr.rel (%p429) target = $region32
        $region31: #{tpu_custom_call.1} parent=11 // pred_region
          _
        $region32: #{tpu_custom_call.1} parent=11 // pred_fallthru
          _
        // Predicated region
        $region33: #{tpu_custom_call.1} parent=11 // pred_check
          %p432 = pneg %p248
        $region34: #{tpu_custom_call.1} parent=11 // pred_check_branch
          %434 = sbr.rel (%p432) target = $region36
        $region35: #{tpu_custom_call.1} parent=11 // pred_region
          _
        $region36: #{tpu_custom_call.1} parent=11 // pred_fallthru
          _
        // Predicated region
        $region37: #{tpu_custom_call.1} parent=11 // pred_check
          %p435 = pneg %p269
        $region38: #{tpu_custom_call.1} parent=11 // pred_check_branch
          %437 = sbr.rel (%p435) target = $region40
        $region39: #{tpu_custom_call.1} parent=11 // pred_region
          _
        $region40: #{tpu_custom_call.1} parent=11 // pred_fallthru
          _
        // Predicated region
        $region41: #{tpu_custom_call.1} parent=11 // pred_check
          %p438 = pneg %p290
        $region42: #{tpu_custom_call.1} parent=11 // pred_check_branch
          %440 = sbr.rel (%p438) target = $region44
        $region43: #{tpu_custom_call.1} parent=11 // pred_region
          _
        $region44: #{tpu_custom_call.1} parent=11 // pred_fallthru
          _
        // Predicated region
        $region45: #{tpu_custom_call.1} parent=11 // pred_check
          %p441 = pneg %p311
        $region46: #{tpu_custom_call.1} parent=11 // pred_check_branch
          %443 = sbr.rel (%p441) target = $region48
        $region47: #{tpu_custom_call.1} parent=11 // pred_region
          _
        $region48: #{tpu_custom_call.1} parent=11 // pred_fallthru
          _
        // Predicated region
        $region49: #{tpu_custom_call.1} parent=11 // pred_check
          %p444 = pneg %p332
        $region50: #{tpu_custom_call.1} parent=11 // pred_check_branch
          %446 = sbr.rel (%p444) target = $region52
        $region51: #{tpu_custom_call.1} parent=11 // pred_region
          _
        $region52: #{tpu_custom_call.1} parent=11 // pred_fallthru
          _
        // Predicated region
        $region53: #{tpu_custom_call.1} parent=11 // pred_check
          %p447 = pneg %p353
        $region54: #{tpu_custom_call.1} parent=11 // pred_check_branch
          %449 = sbr.rel (%p447) target = $region56
        $region55: #{tpu_custom_call.1} parent=11 // pred_region
          _
        $region56: #{tpu_custom_call.1} parent=11 // pred_fallthru
          _
        // Predicated region
        $region57: #{tpu_custom_call.1} parent=11 // pred_check
          %p450 = pneg %p374
        $region58: #{tpu_custom_call.1} parent=11 // pred_check_branch
          %452 = sbr.rel (%p450) target = $region60
        $region59: #{tpu_custom_call.1} parent=11 // pred_region
          _
        $region60: #{tpu_custom_call.1} parent=11 // pred_fallthru
          _
      $region12: #{tpu_custom_call.1} parent=5 // pred_fallthru
        _
      %p453 = scmp.lt.s32.totalorder %s30, 4
      // Predicated region
      $region61: #{tpu_custom_call.1} parent=5 // pred_check
        %p454 = pneg %p453
      $region62: #{tpu_custom_call.1} parent=5 // pred_check_branch
        %456 = sbr.rel (%p454) target = $region64
      $region63: #{tpu_custom_call.1} parent=5 // pred_region
        // Predicated region
        $region65: #{tpu_custom_call.1} parent=63 // pred_check
          %p457 = pneg %p62
        $region66: #{tpu_custom_call.1} parent=63 // pred_check_branch
          %459 = sbr.rel (%p457) target = $region68
        $region67: #{tpu_custom_call.1} parent=63 // pred_region
          %s460 = sand.u32 %s52, 1
          %s461 = scalar_lea.sflag [#allocation5], %s460
          %s462 = sand.u32 %s52, 1
          %s463 = smul.addr %s462, 32
          %s464 = scalar_lea.vmem [#allocation4], %s463
          %466 = vsyncadd %s461, 0
          %s467 = smul.addr %s37, 8
          %s468 = smul.addr %s467, 4
          %s469 = scalar_lea.hbm %s0, %s468
          %s470 = sshll.u32 %s469, 4
          %s471 = int_to_ptr.hbm [resolvable:$true] %s470
          %s472 = sshll.u32 %s464, 4
          %s473 = int_to_ptr.vmem [resolvable:$true] %s472
          %478 = dma.hbm_to_vmem [thread:$0]  %s471, 512, %s473, %s461, 128, 128, 8
        $region68: #{tpu_custom_call.1} parent=63 // pred_fallthru
          _
        // Predicated region
        $region69: #{tpu_custom_call.1} parent=63 // pred_check
          %p479 = pneg %p90
        $region70: #{tpu_custom_call.1} parent=63 // pred_check_branch
          %481 = sbr.rel (%p479) target = $region72
        $region71: #{tpu_custom_call.1} parent=63 // pred_region
          %s482 = sand.u32 %s80, 1
          %s483 = scalar_lea.sflag [#allocation8], %s482
          %s484 = sand.u32 %s80, 1
          %s485 = smul.addr %s484, 16
          %s486 = scalar_lea.vmem [#allocation7], %s485
          %488 = vsyncadd %s483, 0
          %s489 = smul.addr %s37, 8
          %s490 = sadd.s32 %s38, %s489
          %s491 = smul.addr %s490, 4
          %s492 = scalar_lea.hbm %s1, %s491
          %s493 = sshll.u32 %s492, 4
          %s494 = int_to_ptr.hbm [resolvable:$true] %s493
          %s495 = sshll.u32 %s486, 4
          %s496 = int_to_ptr.vmem [resolvable:$true] %s495
          %501 = dma.hbm_to_vmem [thread:$0]  %s494, 256, %s496, %s483, 128, 64, 4
        $region72: #{tpu_custom_call.1} parent=63 // pred_fallthru
          _
        // Predicated region
        $region73: #{tpu_custom_call.1} parent=63 // pred_check
          %p502 = pneg %p116
        $region74: #{tpu_custom_call.1} parent=63 // pred_check_branch
          %504 = sbr.rel (%p502) target = $region76
        $region75: #{tpu_custom_call.1} parent=63 // pred_region
          %p505 = scmp.lt.s32.totalorder %s37, 1
          %s506 = scalar_select %p505, %s37, 1
          %s507 = smul.addr %s506, 2
          %s508 = smul.addr %s507, 8
          %s509 = scalar_lea.vmem %s2, %s508
        $region76: #{tpu_custom_call.1} parent=63 // pred_fallthru
          _
      $region64: #{tpu_custom_call.1} parent=5 // pred_fallthru
        _
      %p510 = scmp.le.s32.totalorder 1, %s30
      %p511 = scmp.lt.s32.totalorder %s30, 5
      %p512 = pnand %p510, %p511
      %p513 = pneg %p512
      // Predicated region
      $region77: #{tpu_custom_call.1} parent=5 // pred_check
        _
      $region78: #{tpu_custom_call.1} parent=5 // pred_check_branch
        %515 = sbr.rel (%p512) target = $region80
      $region79: #{tpu_custom_call.1} parent=5 // pred_region
        %s516 = ssub.s32 %s30, 1
        %s517 = sand.u32 %s55, 1
        %s518 = scalar_lea.sflag [#allocation5], %s517
        %s519 = sand.u32 %s55, 1
        %s520 = smul.addr %s519, 32
        %s521 = scalar_lea.vmem [#allocation4], %s520
        // Predicated region
        $region81: #{tpu_custom_call.1} parent=79 // pred_check
          %p522 = pneg %p68
        $region82: #{tpu_custom_call.1} parent=79 // pred_check_branch
          %524 = sbr.rel (%p522) target = $region84
        $region83: #{tpu_custom_call.1} parent=79 // pred_region
          %526 = dma.done %s518, 512
        $region84: #{tpu_custom_call.1} parent=79 // pred_fallthru
          _
        %s527 = sand.u32 %s83, 1
        %s528 = scalar_lea.sflag [#allocation8], %s527
        %s529 = sand.u32 %s83, 1
        %s530 = smul.addr %s529, 16
        %s531 = scalar_lea.vmem [#allocation7], %s530
        // Predicated region
        $region85: #{tpu_custom_call.1} parent=79 // pred_check
          %p532 = pneg %p96
        $region86: #{tpu_custom_call.1} parent=79 // pred_check_branch
          %534 = sbr.rel (%p532) target = $region88
        $region87: #{tpu_custom_call.1} parent=79 // pred_region
          %536 = dma.done %s528, 256
        $region88: #{tpu_custom_call.1} parent=79 // pred_fallthru
          _
        %s537 = sand.u32 %s55, 1
        %s538 = scalar_lea.sflag [#allocation5], %s537
        %s539 = sand.u32 %s55, 1
        %s540 = smul.addr %s539, 32
        %s541 = scalar_lea.vmem [#allocation4], %s540
        %p542 = pneg %p68
        %p543 = pneg %p65
        %s544 = sand.u32 %s83, 1
        %s545 = scalar_lea.sflag [#allocation8], %s544
        %s546 = sand.u32 %s83, 1
        %s547 = smul.addr %s546, 16
        %s548 = scalar_lea.vmem [#allocation7], %s547
        %p549 = pneg %p96
        %p550 = pneg %p93
        %p551 = scmp.lt.s32.totalorder %s39, 1
        %s552 = scalar_select %p551, %s39, 1
        %s553 = smul.addr %s552, 2
        %s554 = smul.addr %s553, 8
        %s555 = scalar_lea.vmem %s2, %s554
        %p556 = pneg %p122
        %p557 = pneg %p119
        %p558 = pneg %p143
        %p559 = pneg %p140
        %p560 = pneg %p164
        %p561 = pneg %p161
        %p562 = pneg %p185
        %p563 = pneg %p182
        %p564 = pneg %p206
        %p565 = pneg %p203
        %p566 = pneg %p227
        %p567 = pneg %p224
        %p568 = pneg %p248
        %p569 = pneg %p245
        %p570 = pneg %p269
        %p571 = pneg %p266
        %p572 = pneg %p290
        %p573 = pneg %p287
        %p574 = pneg %p311
        %p575 = pneg %p308
        %p576 = pneg %p332
        %p577 = pneg %p329
        %p578 = pneg %p353
        %p579 = pneg %p350
        %p580 = pneg %p374
        %p581 = pneg %p371
        %p582 = pneg %p402
        %p583 = pneg %p399
        %s584 = sand.u32 %s389, 1
        %s585 = scalar_lea.sflag [#allocation6], %s584
        %s586 = sand.u32 %s389, 1
        %s587 = smul.addr %s586, 32
        %s588 = scalar_lea.vmem [#allocation9], %s587
        %p589 = scmp.lt.s32.totalorder %s39, 1
        %s590 = scalar_select %p589, %s39, 1
        %s591 = smul.addr %s590, 2
        %s592 = smul.addr %s591, 8
        %s593 = scalar_lea.vmem %s2, %s592
        %p595 = scmp.eq.s32.totalorder %s40, 0
        // Predicated region
        $region89: #{tpu_custom_call.1} parent=79 // pred_check
          %p596 = pneg %p595
        $region90: #{tpu_custom_call.1} parent=79 // pred_check_branch
          %598 = sbr.rel (%p596) target = $region92
        $region91: #{tpu_custom_call.1} parent=79 // pred_region
          %v599 = vld [vmem:[%s521] sm:$0xff]
          %v600 = vld [vmem:[%s521 + $0x8] sm:$0xff]
          %v601 = vld [vmem:[%s521 + $0x10] sm:$0xff]
          %v602 = vld [vmem:[%s521 + $0x18] sm:$0xff]
          %v603 = vld [vmem:[%s593] sm:$0xff]
          %v604 = vld [vmem:[%s593 + $0x8] sm:$0xff]
          %v605 = vlaneseq
          %v606 = vshrl.u32 %v605, 7
          %v607 = vrot.slane %v603, 4
          %v608 = vmax.f32 %v603, %v607
          %v609 = vrot.slane %v608, 2
          %v610 = vmax.f32 %v608, %v609
          %v611 = vrot.slane %v610, 1
          %v612 = vmax.f32 %v610, %v611
          %v613 = vrot.slane %v604, 4
          %v614 = vmax.f32 %v604, %v613
          %v615 = vrot.slane %v614, 2
          %v616 = vmax.f32 %v614, %v615
          %v617 = vrot.slane %v616, 1
          %v618 = vmax.f32 %v616, %v617
          %vm619 = vcmp.ge.f32.partialorder %v603, %v612
          %vm620 = vcmp.ge.f32.partialorder %v604, %v618
          %v621 = vsel %vm619, %v606, 8
          %v622 = vsel %vm620, %v606, 8
          %v623 = vrot.slane %v621, 4
          %vm624 = vcmp.lt.s32.totalorder %v621, %v623
          %v625 = vsel %vm624, %v621, %v623
          %v626 = vrot.slane %v625, 2
          %vm627 = vcmp.lt.s32.totalorder %v625, %v626
          %v628 = vsel %vm627, %v625, %v626
          %v629 = vrot.slane %v628, 1
          %vm630 = vcmp.lt.s32.totalorder %v628, %v629
          %v631 = vsel %vm630, %v628, %v629
          %v632 = vrot.slane %v622, 4
          %vm633 = vcmp.lt.s32.totalorder %v622, %v632
          %v634 = vsel %vm633, %v622, %v632
          %v635 = vrot.slane %v634, 2
          %vm636 = vcmp.lt.s32.totalorder %v634, %v635
          %v637 = vsel %vm636, %v634, %v635
          %v638 = vrot.slane %v637, 1
          %vm639 = vcmp.lt.s32.totalorder %v637, %v638
          %v640 = vsel %vm639, %v637, %v638
          %vm641 = vcmp.eq.s32.totalorder %v606, %v631
          %vm642 = vcmp.eq.s32.totalorder %v606, %v640
          %v643 = vsel %vm641, %v603, -1e+30
          %v644 = vsel %vm642, %v604, -1e+30
          %v645 = vmax.f32 %v643, %v644
          %646 = vmax.xlane.f32.xlu0 %v645
          %v647 = vpop.xlane.xlu0 %646
          %v648 = vsub.f32 %v643, %v647
          %v649 = vsub.f32 %v644, %v647
          %v650 = vmul.f32 %v648, 1.442695
          %v651 = vpow.pop %v650
          %v652 = vmul.f32 %v649, 1.442695
          %v653 = vpow.pop %v652
          %v654 = vsel %vm641, %v651, 0.0
          %v655 = vsel %vm642, %v653, 0.0
          %v656 = vadd.f32 %v654, %v655
          %657 = vadd.xlane.f32.xlu0 %v656
          %v658 = vpop.xlane.xlu0 %657
          %vm659 = vcmp.gt.f32.partialorder %v658, 0.0
          %v660 = vsel %vm659, %v658, 1.0
          %v661 = vrcp.pop %v660
          %v662 = vmul.f32 %v660, %v661
          %v663 = vsub.f32 1.0, %v662
          %v664 = vmul.f32 %v661, %v663
          %v665 = vadd.f32 %v661, %v664
          %vm666 = vweird.f32 %v660
          %vm667 = vweird.f32 %v661
          %vm668 = vmor %vm666, %vm667
          %v669 = vsel %vm668, %v661, %v665
          %v670 = vand.u32 2147483647, %v660
          %vm671 = vcmp.eq.f32.partialorder %v670, 8.507059e+37
          %v672 = vand.u32 %v660, 2147483648
          %v673 = vor.u32 1.1754944e-38, %v672
          %v674 = vsel %vm671, %v673, %v669
          %v675 = vmul.f32 %v654, %v674
          %v676 = vmul.f32 %v655, %v674
          %v677 = vpack.c.bf16 %v675, %v675
          %v678 = vpack.c.bf16 %v676, %v676
          %v683 = vunpack.c.l.b16 %v599
          %v684 = vunpack.c.h.b16 %v599
          %v685 = vunpack.c.l.b16 %v600
          %v686 = vunpack.c.h.b16 %v600
          %v687 = vunpack.c.l.b16 %v601
          %v688 = vunpack.c.h.b16 %v601
          %v689 = vunpack.c.l.b16 %v602
          %v690 = vunpack.c.h.b16 %v602
          %v691 = vpack.c.b16 %v685, %v683
          %v692 = vpack.c.b16 %v686, %v684
          %v693 = vpack.c.b16 %v689, %v687
          %v694 = vpack.c.b16 %v690, %v688
          %699 = vmatpush.bf16.xpose.msra.mxu0 0
          %700 = vmatpush.bf16.xpose.msra.mxu0 0
          %701 = vmatpush.bf16.xpose.msra.mxu0 0
          %702 = vmatpush.bf16.xpose.msra.mxu0 0
          %703 = vmatpush.bf16.xpose.msra.mxu0 0
          %704 = vmatpush.bf16.xpose.msra.mxu0 0
          %705 = vmatpush.bf16.xpose.msra.mxu0 0
          %706 = vmatpush.bf16.xpose.msra.mxu0 %v677
          %707 = vmatmul.bf16.gmra.mxu0 %v691
          %v708 = vpop.f32.mrf.mxu0
          %v709 = vadd.f32 0.0, %v708
          %v710 = vpop.f32.mrf.mxu0
          %v711 = vadd.f32 0.0, %v710
          %712 = vmatmul.bf16.gmra.mxu0 %v693
          %v713 = vpop.f32.mrf.mxu0
          %v714 = vadd.f32 0.0, %v713
          %v715 = vpop.f32.mrf.mxu0
          %v716 = vadd.f32 0.0, %v715
          %717 = vdwg.mxu0
          %718 = vmatpush.bf16.xpose.msra.mxu0 0
          %719 = vmatpush.bf16.xpose.msra.mxu0 0
          %720 = vmatpush.bf16.xpose.msra.mxu0 0
          %721 = vmatpush.bf16.xpose.msra.mxu0 0
          %722 = vmatpush.bf16.xpose.msra.mxu0 0
          %723 = vmatpush.bf16.xpose.msra.mxu0 0
          %724 = vmatpush.bf16.xpose.msra.mxu0 0
          %725 = vmatpush.bf16.xpose.msra.mxu0 %v678
          %726 = vmatmul.bf16.gmra.mxu0 %v692
          %v727 = vpop.f32.mrf.mxu0
          %v728 = vadd.f32 %v709, %v727
          %v729 = vpop.f32.mrf.mxu0
          %v730 = vadd.f32 %v711, %v729
          %731 = vmatmul.bf16.gmra.mxu0 %v694
          %v732 = vpop.f32.mrf.mxu0
          %v733 = vadd.f32 %v714, %v732
          %v734 = vpop.f32.mrf.mxu0
          %v735 = vadd.f32 %v716, %v734
          %736 = vdwg.mxu0
          %vm737 = vcmp.eq.s32.totalorder %v631, 0
          %vm738 = vcmp.eq.s32.totalorder %v640, 0
          %v739 = vsel %vm737, 1, 0
          %v740 = vsel %vm738, 1, 0
          %vm741 = vcmp.eq.s32.totalorder %v739, 1
          %vm742 = vcmp.eq.s32.totalorder %v740, 1
          %744 = vset.pattern.permute.xlu0 0
          %745 = vperm.xlu0 %744, %v728
          %v746 = vpop.permute.xlu0 %745
          %749 = vset.pattern.permute.xlu0 0
          %750 = vperm.xlu0 %749, %v730
          %v751 = vpop.permute.xlu0 %750
          %754 = vset.pattern.permute.xlu0 0
          %755 = vperm.xlu0 %754, %v733
          %v756 = vpop.permute.xlu0 %755
          %759 = vset.pattern.permute.xlu0 0
          %760 = vperm.xlu0 %759, %v735
          %v761 = vpop.permute.xlu0 %760
          %v763 = vsel %vm741, %v746, 0.0
          %v764 = vsel %vm742, %v746, 0.0
          %v765 = vsel %vm741, %v751, 0.0
          %v766 = vsel %vm742, %v751, 0.0
          %v767 = vsel %vm741, %v756, 0.0
          %v768 = vsel %vm742, %v756, 0.0
          %v769 = vsel %vm741, %v761, 0.0
          %v770 = vsel %vm742, %v761, 0.0
          %vm771 = vcmp.eq.s32.totalorder %v631, 1
          %vm772 = vcmp.eq.s32.totalorder %v640, 1
          %v773 = vsel %vm771, 1, 0
          %v774 = vsel %vm772, 1, 0
          %vm775 = vcmp.eq.s32.totalorder %v773, 1
          %vm776 = vcmp.eq.s32.totalorder %v774, 1
          %777 = vset.pattern.permute.xlu0 1
          %778 = vperm.xlu0 %777, %v728
          %v779 = vpop.permute.xlu0 %778
          %781 = vset.pattern.permute.xlu0 1
          %782 = vperm.xlu0 %781, %v730
          %v783 = vpop.permute.xlu0 %782
          %785 = vset.pattern.permute.xlu0 1
          %786 = vperm.xlu0 %785, %v733
          %v787 = vpop.permute.xlu0 %786
          %789 = vset.pattern.permute.xlu0 1
          %790 = vperm.xlu0 %789, %v735
          %v791 = vpop.permute.xlu0 %790
          %v793 = vsel %vm775, %v779, %v763
          %v794 = vsel %vm776, %v779, %v764
          %v795 = vsel %vm775, %v783, %v765
          %v796 = vsel %vm776, %v783, %v766
          %v797 = vsel %vm775, %v787, %v767
          %v798 = vsel %vm776, %v787, %v768
          %v799 = vsel %vm775, %v791, %v769
          %v800 = vsel %vm776, %v791, %v770
          %vm801 = vcmp.eq.s32.totalorder %v631, 2
          %vm802 = vcmp.eq.s32.totalorder %v640, 2
          %v803 = vsel %vm801, 1, 0
          %v804 = vsel %vm802, 1, 0
          %vm805 = vcmp.eq.s32.totalorder %v803, 1
          %vm806 = vcmp.eq.s32.totalorder %v804, 1
          %807 = vset.pattern.permute.xlu0 2
          %808 = vperm.xlu0 %807, %v728
          %v809 = vpop.permute.xlu0 %808
          %811 = vset.pattern.permute.xlu0 2
          %812 = vperm.xlu0 %811, %v730
          %v813 = vpop.permute.xlu0 %812
          %815 = vset.pattern.permute.xlu0 2
          %816 = vperm.xlu0 %815, %v733
          %v817 = vpop.permute.xlu0 %816
          %819 = vset.pattern.permute.xlu0 2
          %820 = vperm.xlu0 %819, %v735
          %v821 = vpop.permute.xlu0 %820
          %v823 = vsel %vm805, %v809, %v793
          %v824 = vsel %vm806, %v809, %v794
          %v825 = vsel %vm805, %v813, %v795
          %v826 = vsel %vm806, %v813, %v796
          %v827 = vsel %vm805, %v817, %v797
          %v828 = vsel %vm806, %v817, %v798
          %v829 = vsel %vm805, %v821, %v799
          %v830 = vsel %vm806, %v821, %v800
          %vm831 = vcmp.eq.s32.totalorder %v631, 3
          %vm832 = vcmp.eq.s32.totalorder %v640, 3
          %v833 = vsel %vm831, 1, 0
          %v834 = vsel %vm832, 1, 0
          %vm835 = vcmp.eq.s32.totalorder %v833, 1
          %vm836 = vcmp.eq.s32.totalorder %v834, 1
          %837 = vset.pattern.permute.xlu0 3
          %838 = vperm.xlu0 %837, %v728
          %v839 = vpop.permute.xlu0 %838
          %841 = vset.pattern.permute.xlu0 3
          %842 = vperm.xlu0 %841, %v730
          %v843 = vpop.permute.xlu0 %842
          %845 = vset.pattern.permute.xlu0 3
          %846 = vperm.xlu0 %845, %v733
          %v847 = vpop.permute.xlu0 %846
          %849 = vset.pattern.permute.xlu0 3
          %850 = vperm.xlu0 %849, %v735
          %v851 = vpop.permute.xlu0 %850
          %v853 = vsel %vm835, %v839, %v823
          %v854 = vsel %vm836, %v839, %v824
          %v855 = vsel %vm835, %v843, %v825
          %v856 = vsel %vm836, %v843, %v826
          %v857 = vsel %vm835, %v847, %v827
          %v858 = vsel %vm836, %v847, %v828
          %v859 = vsel %vm835, %v851, %v829
          %v860 = vsel %vm836, %v851, %v830
          %vm861 = vcmp.eq.s32.totalorder %v631, 4
          %vm862 = vcmp.eq.s32.totalorder %v640, 4
          %v863 = vsel %vm861, 1, 0
          %v864 = vsel %vm862, 1, 0
          %vm865 = vcmp.eq.s32.totalorder %v863, 1
          %vm866 = vcmp.eq.s32.totalorder %v864, 1
          %867 = vset.pattern.permute.xlu0 4
          %868 = vperm.xlu0 %867, %v728
          %v869 = vpop.permute.xlu0 %868
          %871 = vset.pattern.permute.xlu0 4
          %872 = vperm.xlu0 %871, %v730
          %v873 = vpop.permute.xlu0 %872
          %875 = vset.pattern.permute.xlu0 4
          %876 = vperm.xlu0 %875, %v733
          %v877 = vpop.permute.xlu0 %876
          %879 = vset.pattern.permute.xlu0 4
          %880 = vperm.xlu0 %879, %v735
          %v881 = vpop.permute.xlu0 %880
          %v883 = vsel %vm865, %v869, %v853
          %v884 = vsel %vm866, %v869, %v854
          %v885 = vsel %vm865, %v873, %v855
          %v886 = vsel %vm866, %v873, %v856
          %v887 = vsel %vm865, %v877, %v857
          %v888 = vsel %vm866, %v877, %v858
          %v889 = vsel %vm865, %v881, %v859
          %v890 = vsel %vm866, %v881, %v860
          %vm891 = vcmp.eq.s32.totalorder %v631, 5
          %vm892 = vcmp.eq.s32.totalorder %v640, 5
          %v893 = vsel %vm891, 1, 0
          %v894 = vsel %vm892, 1, 0
          %vm895 = vcmp.eq.s32.totalorder %v893, 1
          %vm896 = vcmp.eq.s32.totalorder %v894, 1
          %897 = vset.pattern.permute.xlu0 5
          %898 = vperm.xlu0 %897, %v728
          %v899 = vpop.permute.xlu0 %898
          %901 = vset.pattern.permute.xlu0 5
          %902 = vperm.xlu0 %901, %v730
          %v903 = vpop.permute.xlu0 %902
          %905 = vset.pattern.permute.xlu0 5
          %906 = vperm.xlu0 %905, %v733
          %v907 = vpop.permute.xlu0 %906
          %909 = vset.pattern.permute.xlu0 5
          %910 = vperm.xlu0 %909, %v735
          %v911 = vpop.permute.xlu0 %910
          %v913 = vsel %vm895, %v899, %v883
          %v914 = vsel %vm896, %v899, %v884
          %v915 = vsel %vm895, %v903, %v885
          %v916 = vsel %vm896, %v903, %v886
          %v917 = vsel %vm895, %v907, %v887
          %v918 = vsel %vm896, %v907, %v888
          %v919 = vsel %vm895, %v911, %v889
          %v920 = vsel %vm896, %v911, %v890
          %vm921 = vcmp.eq.s32.totalorder %v631, 6
          %vm922 = vcmp.eq.s32.totalorder %v640, 6
          %v923 = vsel %vm921, 1, 0
          %v924 = vsel %vm922, 1, 0
          %vm925 = vcmp.eq.s32.totalorder %v923, 1
          %vm926 = vcmp.eq.s32.totalorder %v924, 1
          %927 = vset.pattern.permute.xlu0 6
          %928 = vperm.xlu0 %927, %v728
          %v929 = vpop.permute.xlu0 %928
          %931 = vset.pattern.permute.xlu0 6
          %932 = vperm.xlu0 %931, %v730
          %v933 = vpop.permute.xlu0 %932
          %935 = vset.pattern.permute.xlu0 6
          %936 = vperm.xlu0 %935, %v733
          %v937 = vpop.permute.xlu0 %936
          %939 = vset.pattern.permute.xlu0 6
          %940 = vperm.xlu0 %939, %v735
          %v941 = vpop.permute.xlu0 %940
          %v943 = vsel %vm925, %v929, %v913
          %v944 = vsel %vm926, %v929, %v914
          %v945 = vsel %vm925, %v933, %v915
          %v946 = vsel %vm926, %v933, %v916
          %v947 = vsel %vm925, %v937, %v917
          %v948 = vsel %vm926, %v937, %v918
          %v949 = vsel %vm925, %v941, %v919
          %v950 = vsel %vm926, %v941, %v920
          %vm951 = vcmp.eq.s32.totalorder %v631, 7
          %vm952 = vcmp.eq.s32.totalorder %v640, 7
          %v953 = vsel %vm951, 1, 0
          %v954 = vsel %vm952, 1, 0
          %vm955 = vcmp.eq.s32.totalorder %v953, 1
          %vm956 = vcmp.eq.s32.totalorder %v954, 1
          %957 = vset.pattern.permute.xlu0 7
          %958 = vperm.xlu0 %957, %v728
          %v959 = vpop.permute.xlu0 %958
          %961 = vset.pattern.permute.xlu0 7
          %962 = vperm.xlu0 %961, %v730
          %v963 = vpop.permute.xlu0 %962
          %965 = vset.pattern.permute.xlu0 7
          %966 = vperm.xlu0 %965, %v733
          %v967 = vpop.permute.xlu0 %966
          %969 = vset.pattern.permute.xlu0 7
          %970 = vperm.xlu0 %969, %v735
          %v971 = vpop.permute.xlu0 %970
          %v973 = vsel %vm955, %v959, %v943
          %v974 = vsel %vm956, %v959, %v944
          %v975 = vsel %vm955, %v963, %v945
          %v976 = vsel %vm956, %v963, %v946
          %v977 = vsel %vm955, %v967, %v947
          %v978 = vsel %vm956, %v967, %v948
          %v979 = vsel %vm955, %v971, %v949
          %v980 = vsel %vm956, %v971, %v950
          %v981 = vpack.c.bf16 %v975, %v973
          %v982 = vpack.c.bf16 %v976, %v974
          %v983 = vpack.c.bf16 %v979, %v977
          %v984 = vpack.c.bf16 %v980, %v978
          %v985 = vld [vmem:[%s7] sm:$0xf]
          %v986 = vld [vmem:[%s7 + $0x4] sm:$0xf]
          %v987 = vld [vmem:[%s8] sm:$0xff]
          %v988 = vld [vmem:[%s8 + $0x8] sm:$0xff]
          %990 = vset.pattern.permute.xlu0 0
          %991 = vperm.xlu0 %990, %v987
          %v992 = vpop.permute.xlu0 %991
          %995 = vset.pattern.permute.xlu0 0
          %996 = vperm.xlu0 %995, %v988
          %v997 = vpop.permute.xlu0 %996
          %v1001 = vunpack.c.l.b16 %v985
          %v1002 = vunpack.c.l.b16 %v986
          %v1003 = vpack.c.b16 %v1002, %v1001
          %vm1004 = vcmask 261120
          %v1006 = vsel %vm1004, %v1003, 0
          %1008 = vmatpush.bf16.msra.mxu0 0
          %1009 = vmatpush.bf16.msra.mxu0 0
          %1010 = vmatpush.bf16.msra.mxu0 0
          %1011 = vmatpush.bf16.msra.mxu0 0
          %1012 = vmatpush.bf16.msra.mxu0 0
          %1013 = vmatpush.bf16.msra.mxu0 0
          %1014 = vmatpush.bf16.msra.mxu0 %v983
          %1015 = vmatpush.bf16.msra.mxu0 %v981
          %1016 = vmatmul.bf16.gmra.mxu0 %v1006
          %v1017 = vpop.f32.mrf.mxu0
          %v1018 = vadd.f32 %v992, %v1017
          %v1019 = vpop.f32.mrf.mxu0
          %v1020 = vadd.f32 %v997, %v1019
          %1021 = vdwg.mxu0
          %1022 = vmatpush.bf16.msra.mxu0 0
          %1023 = vmatpush.bf16.msra.mxu0 0
          %1024 = vmatpush.bf16.msra.mxu0 0
          %1025 = vmatpush.bf16.msra.mxu0 0
          %1026 = vmatpush.bf16.msra.mxu0 0
          %1027 = vmatpush.bf16.msra.mxu0 0
          %1028 = vmatpush.bf16.msra.mxu0 %v984
          %1029 = vmatpush.bf16.msra.mxu0 %v982
          %1030 = vmatmul.bf16.gmra.mxu0 %v1006
          %v1031 = vpop.f32.mrf.mxu0
          %v1032 = vadd.f32 %v992, %v1031
          %v1033 = vpop.f32.mrf.mxu0
          %v1034 = vadd.f32 %v997, %v1033
          %1035 = vdwg.mxu0
          %v1036 = vmax.f32 %v1018, 0.0
          %v1037 = vmax.f32 %v1032, 0.0
          %v1038 = vmax.f32 %v1020, 0.0
          %v1039 = vmax.f32 %v1034, 0.0
          %v1040 = vpack.c.bf16 %v1038, %v1036
          %v1041 = vpack.c.bf16 %v1039, %v1037
          %v1042 = vld [vmem:[%s9] sm:$0xf]
          %v1043 = vld [vmem:[%s9 + $0x4] sm:$0xf]
          %v1044 = vld [vmem:[%s10] sm:$0xff]
          %v1045 = vld [vmem:[%s10 + $0x8] sm:$0xff]
          %1047 = vset.pattern.permute.xlu0 0
          %1048 = vperm.xlu0 %1047, %v1044
          %v1049 = vpop.permute.xlu0 %1048
          %1052 = vset.pattern.permute.xlu0 0
          %1053 = vperm.xlu0 %1052, %v1045
          %v1054 = vpop.permute.xlu0 %1053
          %v1058 = vunpack.c.l.b16 %v1042
          %v1059 = vunpack.c.l.b16 %v1043
          %v1060 = vpack.c.b16 %v1059, %v1058
          %vm1061 = vcmask 130048
          %v1063 = vsel %vm1061, %v1060, 0
          %1065 = vmatpush.bf16.msra.mxu0 0
          %1066 = vmatpush.bf16.msra.mxu0 0
          %1067 = vmatpush.bf16.msra.mxu0 0
          %1068 = vmatpush.bf16.msra.mxu0 0
          %1069 = vmatpush.bf16.msra.mxu0 0
          %1070 = vmatpush.bf16.msra.mxu0 0
          %1071 = vmatpush.bf16.msra.mxu0 0
          %1072 = vmatpush.bf16.msra.mxu0 %v1040
          %1073 = vmatmul.bf16.gmra.mxu0 %v1063
          %v1074 = vpop.f32.mrf.mxu0
          %v1075 = vadd.f32 %v1049, %v1074
          %v1076 = vpop.f32.mrf.mxu0
          %v1077 = vadd.f32 %v1054, %v1076
          %1078 = vdwg.mxu0
          %1079 = vmatpush.bf16.msra.mxu0 0
          %1080 = vmatpush.bf16.msra.mxu0 0
          %1081 = vmatpush.bf16.msra.mxu0 0
          %1082 = vmatpush.bf16.msra.mxu0 0
          %1083 = vmatpush.bf16.msra.mxu0 0
          %1084 = vmatpush.bf16.msra.mxu0 0
          %1085 = vmatpush.bf16.msra.mxu0 0
          %1086 = vmatpush.bf16.msra.mxu0 %v1041
          %1087 = vmatmul.bf16.gmra.mxu0 %v1063
          %v1088 = vpop.f32.mrf.mxu0
          %v1089 = vadd.f32 %v1049, %v1088
          %v1090 = vpop.f32.mrf.mxu0
          %v1091 = vadd.f32 %v1054, %v1090
          %1092 = vdwg.mxu0
          %v1093 = vmax.f32 %v1075, 0.0
          %v1094 = vmax.f32 %v1089, 0.0
          %v1095 = vmax.f32 %v1077, 0.0
          %v1096 = vmax.f32 %v1091, 0.0
          %v1097 = vpack.c.bf16 %v1094, %v1093
          %v1098 = vpack.c.bf16 %v1096, %v1095
          %1099 = vst [vmem:[#allocation2] sm:$0xff] %v1097
          %1100 = vst [vmem:[#allocation2 + $0x8] sm:$0xff] %v1098
          %v1101 = vld [vmem:[%s11] sm:$0xf]
          %v1102 = vld [vmem:[%s11 + $0x4] sm:$0xf]
          %v1103 = vld [vmem:[%s12] sm:$0xff]
          %v1104 = vld [vmem:[%s12 + $0x8] sm:$0xff]
          %1106 = vset.pattern.permute.xlu0 0
          %1107 = vperm.xlu0 %1106, %v1103
          %v1108 = vpop.permute.xlu0 %1107
          %1111 = vset.pattern.permute.xlu0 0
          %1112 = vperm.xlu0 %1111, %v1104
          %v1113 = vpop.permute.xlu0 %1112
          %v1117 = vunpack.c.l.b16 %v1101
          %v1118 = vunpack.c.l.b16 %v1102
          %v1119 = vpack.c.b16 %v1118, %v1117
          %v1121 = vsel %vm1004, %v1119, 0
          %1123 = vmatpush.bf16.msra.mxu0 0
          %1124 = vmatpush.bf16.msra.mxu0 0
          %1125 = vmatpush.bf16.msra.mxu0 0
          %1126 = vmatpush.bf16.msra.mxu0 0
          %1127 = vmatpush.bf16.msra.mxu0 0
          %1128 = vmatpush.bf16.msra.mxu0 0
          %1129 = vmatpush.bf16.msra.mxu0 %v983
          %1130 = vmatpush.bf16.msra.mxu0 %v981
          %1131 = vmatmul.bf16.gmra.mxu0 %v1121
          %v1132 = vpop.f32.mrf.mxu0
          %v1133 = vadd.f32 %v1108, %v1132
          %v1134 = vpop.f32.mrf.mxu0
          %v1135 = vadd.f32 %v1113, %v1134
          %1136 = vdwg.mxu0
          %1137 = vmatpush.bf16.msra.mxu0 0
          %1138 = vmatpush.bf16.msra.mxu0 0
          %1139 = vmatpush.bf16.msra.mxu0 0
          %1140 = vmatpush.bf16.msra.mxu0 0
          %1141 = vmatpush.bf16.msra.mxu0 0
          %1142 = vmatpush.bf16.msra.mxu0 0
          %1143 = vmatpush.bf16.msra.mxu0 %v984
          %1144 = vmatpush.bf16.msra.mxu0 %v982
          %1145 = vmatmul.bf16.gmra.mxu0 %v1121
          %v1146 = vpop.f32.mrf.mxu0
          %v1147 = vadd.f32 %v1108, %v1146
          %v1148 = vpop.f32.mrf.mxu0
          %v1149 = vadd.f32 %v1113, %v1148
          %1150 = vdwg.mxu0
          %v1151 = vmax.f32 %v1133, 0.0
          %v1152 = vmax.f32 %v1147, 0.0
          %v1153 = vmax.f32 %v1135, 0.0
          %v1154 = vmax.f32 %v1149, 0.0
          %v1155 = vpack.c.bf16 %v1152, %v1151
          %v1156 = vpack.c.bf16 %v1154, %v1153
          %1157 = vst [vmem:[#allocation3] sm:$0xff] %v1155
          %1158 = vst [vmem:[#allocation3 + $0x8] sm:$0xff] %v1156
        $region92: #{tpu_custom_call.1} parent=79 // pred_fallthru
          _
        %v1159 = vld [vmem:[%s531] sm:$0xf]
        %v1160 = vld [vmem:[%s531 + $0x4] sm:$0xf]
        %v1161 = vld [vmem:[%s531 + $0x8] sm:$0xf]
        %v1162 = vld [vmem:[%s531 + $0xc] sm:$0xf]
        %v1163 = vld [vmem:[%s3] sm:$0xf]
        %v1164 = vld [vmem:[%s3 + $0x4] sm:$0xf]
        %v1165 = vld [vmem:[%s4] sm:$0xff]
        %v1166 = vld [vmem:[%s4 + $0x8] sm:$0xff]
        %1168 = vset.pattern.permute.xlu0 0
        %1169 = vperm.xlu0 %1168, %v1165
        %v1170 = vpop.permute.xlu0 %1169
        %1173 = vset.pattern.permute.xlu0 0
        %1174 = vperm.xlu0 %1173, %v1166
        %v1175 = vpop.permute.xlu0 %1174
        %v1179 = vunpack.c.l.b16 %v1163
        %v1180 = vunpack.c.l.b16 %v1164
        %v1181 = vpack.c.b16 %v1180, %v1179
        %v1186 = vunpack.c.l.b16 %v1159
        %v1187 = vunpack.c.l.b16 %v1160
        %v1188 = vunpack.c.l.b16 %v1161
        %v1189 = vunpack.c.l.b16 %v1162
        %v1190 = vpack.c.b16 %v1187, %v1186
        %v1191 = vpack.c.b16 %v1189, %v1188
        %vm1194 = vcmask 261120
        %v1196 = vsel %vm1194, %v1181, 0
        %1198 = vmatpush.bf16.msra.mxu0 0
        %1199 = vmatpush.bf16.msra.mxu0 0
        %1200 = vmatpush.bf16.msra.mxu0 0
        %1201 = vmatpush.bf16.msra.mxu0 0
        %1202 = vmatpush.bf16.msra.mxu0 0
        %1203 = vmatpush.bf16.msra.mxu0 0
        %1204 = vmatpush.bf16.msra.mxu0 %v1191
        %1205 = vmatpush.bf16.msra.mxu0 %v1190
        %1206 = vmatmul.bf16.gmra.mxu0 %v1196
        %v1207 = vpop.f32.mrf.mxu0
        %v1208 = vadd.f32 %v1170, %v1207
        %v1209 = vpop.f32.mrf.mxu0
        %v1210 = vadd.f32 %v1175, %v1209
        %1211 = vdwg.mxu0
        %v1212 = vmax.f32 %v1208, 0.0
        %v1213 = vmax.f32 %v1210, 0.0
        %v1214 = vpack.c.bf16 %v1213, %v1212
        %v1215 = vld [vmem:[%s5] sm:$0xf]
        %v1216 = vld [vmem:[%s5 + $0x4] sm:$0xf]
        %v1217 = vld [vmem:[%s6] sm:$0xff]
        %v1218 = vld [vmem:[%s6 + $0x8] sm:$0xff]
        %1220 = vset.pattern.permute.xlu0 0
        %1221 = vperm.xlu0 %1220, %v1217
        %v1222 = vpop.permute.xlu0 %1221
        %1225 = vset.pattern.permute.xlu0 0
        %1226 = vperm.xlu0 %1225, %v1218
        %v1227 = vpop.permute.xlu0 %1226
        %v1231 = vunpack.c.l.b16 %v1215
        %v1232 = vunpack.c.l.b16 %v1216
        %v1233 = vpack.c.b16 %v1232, %v1231
        %vm1234 = vcmask 130048
        %v1236 = vsel %vm1234, %v1233, 0
        %1238 = vmatpush.bf16.msra.mxu0 0
        %1239 = vmatpush.bf16.msra.mxu0 0
        %1240 = vmatpush.bf16.msra.mxu0 0
        %1241 = vmatpush.bf16.msra.mxu0 0
        %1242 = vmatpush.bf16.msra.mxu0 0
        %1243 = vmatpush.bf16.msra.mxu0 0
        %1244 = vmatpush.bf16.msra.mxu0 0
        %1245 = vmatpush.bf16.msra.mxu0 %v1214
        %1246 = vmatmul.bf16.gmra.mxu0 %v1236
        %v1247 = vpop.f32.mrf.mxu0
        %v1248 = vadd.f32 %v1222, %v1247
        %v1249 = vpop.f32.mrf.mxu0
        %v1250 = vadd.f32 %v1227, %v1249
        %1251 = vdwg.mxu0
        %v1252 = vmax.f32 %v1248, 0.0
        %v1253 = vmax.f32 %v1250, 0.0
        %v1254 = vmul.f32 %v1252, 0.25
        %v1255 = vmul.f32 %v1253, 0.25
        %v1256 = vpack.c.bf16 %v1255, %v1254
        %v1257 = vld [vmem:[#allocation2] sm:$0xff]
        %v1258 = vld [vmem:[#allocation2 + $0x8] sm:$0xff]
        %1259 = vxpose.xlu0.c.b16.start [1/8] %v1256, 128
        %1260 = vxpose.xlu0.c.b16.cont [2/8] 0, 128
        %1261 = vxpose.xlu0.c.b16.cont [3/8] 0, 128
        %1262 = vxpose.xlu0.c.b16.cont [4/8] 0, 128
        %1263 = vxpose.xlu0.c.b16.cont [5/8] 0, 128
        %1264 = vxpose.xlu0.c.b16.cont [6/8] 0, 128
        %1265 = vxpose.xlu0.c.b16.cont [7/8] 0, 128
        %1266 = vxpose.xlu0.c.b16.end [8/8] 0, 128
        %v1267 = vpop.trf.xlu0
        %v1268 = vpop.trf.xlu0
        %v1269 = vpop.trf.xlu0
        %v1270 = vpop.trf.xlu0
        %v1271 = vpop.trf.xlu0
        %v1272 = vpop.trf.xlu0
        %v1273 = vpop.trf.xlu0
        %v1274 = vpop.trf.xlu0
        %v1277 = vunpack.c.l.b16 %v1257
        %v1278 = vunpack.c.h.b16 %v1257
        %v1279 = vunpack.c.l.b16 %v1258
        %v1280 = vunpack.c.h.b16 %v1258
        %v1281 = vpack.c.b16 %v1279, %v1277
        %v1282 = vpack.c.b16 %v1280, %v1278
        %v1286 = vsel %vm1234, %v1267, 0
        %v1289 = vsel %vm1234, %v1268, 0
        %v1292 = vsel %vm1234, %v1269, 0
        %v1295 = vsel %vm1234, %v1270, 0
        %v1298 = vsel %vm1234, %v1271, 0
        %v1301 = vsel %vm1234, %v1272, 0
        %v1304 = vsel %vm1234, %v1273, 0
        %v1307 = vsel %vm1234, %v1274, 0
        %1309 = vmatpush.bf16.msra.mxu0 0
        %1310 = vmatpush.bf16.msra.mxu0 0
        %1311 = vmatpush.bf16.msra.mxu0 0
        %1312 = vmatpush.bf16.msra.mxu0 0
        %1313 = vmatpush.bf16.msra.mxu0 0
        %1314 = vmatpush.bf16.msra.mxu0 0
        %1315 = vmatpush.bf16.msra.mxu0 0
        %1316 = vmatpush.bf16.msra.mxu0 %v1281
        %1317 = vmatmul.bf16.gmra.mxu0 %v1286
        %v1318 = vpop.f32.mrf.mxu0
        %v1319 = vadd.f32 0.0, %v1318
        %v1320 = vpop.f32.mrf.mxu0
        %v1321 = vadd.f32 0.0, %v1320
        %1322 = vmatmul.bf16.gmra.mxu0 %v1289
        %v1323 = vpop.f32.mrf.mxu0
        %v1324 = vadd.f32 0.0, %v1323
        %v1325 = vpop.f32.mrf.mxu0
        %v1326 = vadd.f32 0.0, %v1325
        %1327 = vmatmul.bf16.gmra.mxu0 %v1292
        %v1328 = vpop.f32.mrf.mxu0
        %v1329 = vadd.f32 0.0, %v1328
        %v1330 = vpop.f32.mrf.mxu0
        %v1331 = vadd.f32 0.0, %v1330
        %1332 = vmatmul.bf16.gmra.mxu0 %v1295
        %v1333 = vpop.f32.mrf.mxu0
        %v1334 = vadd.f32 0.0, %v1333
        %v1335 = vpop.f32.mrf.mxu0
        %v1336 = vadd.f32 0.0, %v1335
        %1337 = vmatmul.bf16.gmra.mxu0 %v1298
        %v1338 = vpop.f32.mrf.mxu0
        %v1339 = vadd.f32 0.0, %v1338
        %v1340 = vpop.f32.mrf.mxu0
        %v1341 = vadd.f32 0.0, %v1340
        %1342 = vmatmul.bf16.gmra.mxu0 %v1301
        %v1343 = vpop.f32.mrf.mxu0
        %v1344 = vadd.f32 0.0, %v1343
        %v1345 = vpop.f32.mrf.mxu0
        %v1346 = vadd.f32 0.0, %v1345
        %1347 = vmatmul.bf16.gmra.mxu0 %v1304
        %v1348 = vpop.f32.mrf.mxu0
        %v1349 = vadd.f32 0.0, %v1348
        %v1350 = vpop.f32.mrf.mxu0
        %v1351 = vadd.f32 0.0, %v1350
        %1352 = vmatmul.bf16.gmra.mxu0 %v1307
        %v1353 = vpop.f32.mrf.mxu0
        %v1354 = vadd.f32 0.0, %v1353
        %v1355 = vpop.f32.mrf.mxu0
        %v1356 = vadd.f32 0.0, %v1355
        %1357 = vdwg.mxu0
        %1358 = vmatpush.bf16.msra.mxu0 0
        %1359 = vmatpush.bf16.msra.mxu0 0
        %1360 = vmatpush.bf16.msra.mxu0 0
        %1361 = vmatpush.bf16.msra.mxu0 0
        %1362 = vmatpush.bf16.msra.mxu0 0
        %1363 = vmatpush.bf16.msra.mxu0 0
        %1364 = vmatpush.bf16.msra.mxu0 0
        %1365 = vmatpush.bf16.msra.mxu0 %v1282
        %1366 = vmatmul.bf16.gmra.mxu0 %v1286
        %v1367 = vpop.f32.mrf.mxu0
        %v1368 = vadd.f32 0.0, %v1367
        %v1369 = vpop.f32.mrf.mxu0
        %v1370 = vadd.f32 0.0, %v1369
        %1371 = vmatmul.bf16.gmra.mxu0 %v1289
        %v1372 = vpop.f32.mrf.mxu0
        %v1373 = vadd.f32 0.0, %v1372
        %v1374 = vpop.f32.mrf.mxu0
        %v1375 = vadd.f32 0.0, %v1374
        %1376 = vmatmul.bf16.gmra.mxu0 %v1292
        %v1377 = vpop.f32.mrf.mxu0
        %v1378 = vadd.f32 0.0, %v1377
        %v1379 = vpop.f32.mrf.mxu0
        %v1380 = vadd.f32 0.0, %v1379
        %1381 = vmatmul.bf16.gmra.mxu0 %v1295
        %v1382 = vpop.f32.mrf.mxu0
        %v1383 = vadd.f32 0.0, %v1382
        %v1384 = vpop.f32.mrf.mxu0
        %v1385 = vadd.f32 0.0, %v1384
        %1386 = vmatmul.bf16.gmra.mxu0 %v1298
        %v1387 = vpop.f32.mrf.mxu0
        %v1388 = vadd.f32 0.0, %v1387
        %v1389 = vpop.f32.mrf.mxu0
        %v1390 = vadd.f32 0.0, %v1389
        %1391 = vmatmul.bf16.gmra.mxu0 %v1301
        %v1392 = vpop.f32.mrf.mxu0
        %v1393 = vadd.f32 0.0, %v1392
        %v1394 = vpop.f32.mrf.mxu0
        %v1395 = vadd.f32 0.0, %v1394
        %1396 = vmatmul.bf16.gmra.mxu0 %v1304
        %v1397 = vpop.f32.mrf.mxu0
        %v1398 = vadd.f32 0.0, %v1397
        %v1399 = vpop.f32.mrf.mxu0
        %v1400 = vadd.f32 0.0, %v1399
        %1401 = vmatmul.bf16.gmra.mxu0 %v1307
        %v1402 = vpop.f32.mrf.mxu0
        %v1403 = vadd.f32 0.0, %v1402
        %v1404 = vpop.f32.mrf.mxu0
        %v1405 = vadd.f32 0.0, %v1404
        %1406 = vdwg.mxu0
        %v1407 = vmax.f32 %v1319, %v1368
        %1408 = vmax.xlane.f32.xlu0 %v1407
        %v1409 = vpop.xlane.xlu0 %1408
        %v1410 = vmax.f32 %v1321, %v1370
        %1411 = vmax.xlane.f32.xlu0 %v1410
        %v1412 = vpop.xlane.xlu0 %1411
        %v1413 = vmax.f32 %v1324, %v1373
        %1414 = vmax.xlane.f32.xlu0 %v1413
        %v1415 = vpop.xlane.xlu0 %1414
        %v1416 = vmax.f32 %v1326, %v1375
        %1417 = vmax.xlane.f32.xlu0 %v1416
        %v1418 = vpop.xlane.xlu0 %1417
        %v1419 = vmax.f32 %v1329, %v1378
        %1420 = vmax.xlane.f32.xlu0 %v1419
        %v1421 = vpop.xlane.xlu0 %1420
        %v1422 = vmax.f32 %v1331, %v1380
        %1423 = vmax.xlane.f32.xlu0 %v1422
        %v1424 = vpop.xlane.xlu0 %1423
        %v1425 = vmax.f32 %v1334, %v1383
        %1426 = vmax.xlane.f32.xlu0 %v1425
        %v1427 = vpop.xlane.xlu0 %1426
        %v1428 = vmax.f32 %v1336, %v1385
        %1429 = vmax.xlane.f32.xlu0 %v1428
        %v1430 = vpop.xlane.xlu0 %1429
        %v1431 = vmax.f32 %v1339, %v1388
        %1432 = vmax.xlane.f32.xlu0 %v1431
        %v1433 = vpop.xlane.xlu0 %1432
        %v1434 = vmax.f32 %v1341, %v1390
        %1435 = vmax.xlane.f32.xlu0 %v1434
        %v1436 = vpop.xlane.xlu0 %1435
        %v1437 = vmax.f32 %v1344, %v1393
        %1438 = vmax.xlane.f32.xlu0 %v1437
        %v1439 = vpop.xlane.xlu0 %1438
        %v1440 = vmax.f32 %v1346, %v1395
        %1441 = vmax.xlane.f32.xlu0 %v1440
        %v1442 = vpop.xlane.xlu0 %1441
        %v1443 = vmax.f32 %v1349, %v1398
        %1444 = vmax.xlane.f32.xlu0 %v1443
        %v1445 = vpop.xlane.xlu0 %1444
        %v1446 = vmax.f32 %v1351, %v1400
        %1447 = vmax.xlane.f32.xlu0 %v1446
        %v1448 = vpop.xlane.xlu0 %1447
        %v1449 = vmax.f32 %v1354, %v1403
        %1450 = vmax.xlane.f32.xlu0 %v1449
        %v1451 = vpop.xlane.xlu0 %1450
        %v1452 = vmax.f32 %v1356, %v1405
        %1453 = vmax.xlane.f32.xlu0 %v1452
        %v1454 = vpop.xlane.xlu0 %1453
        %v1455 = vsub.f32 %v1319, %v1409
        %v1456 = vsub.f32 %v1368, %v1409
        %v1457 = vsub.f32 %v1321, %v1412
        %v1458 = vsub.f32 %v1370, %v1412
        %v1459 = vsub.f32 %v1324, %v1415
        %v1460 = vsub.f32 %v1373, %v1415
        %v1461 = vsub.f32 %v1326, %v1418
        %v1462 = vsub.f32 %v1375, %v1418
        %v1463 = vsub.f32 %v1329, %v1421
        %v1464 = vsub.f32 %v1378, %v1421
        %v1465 = vsub.f32 %v1331, %v1424
        %v1466 = vsub.f32 %v1380, %v1424
        %v1467 = vsub.f32 %v1334, %v1427
        %v1468 = vsub.f32 %v1383, %v1427
        %v1469 = vsub.f32 %v1336, %v1430
        %v1470 = vsub.f32 %v1385, %v1430
        %v1471 = vsub.f32 %v1339, %v1433
        %v1472 = vsub.f32 %v1388, %v1433
        %v1473 = vsub.f32 %v1341, %v1436
        %v1474 = vsub.f32 %v1390, %v1436
        %v1475 = vsub.f32 %v1344, %v1439
        %v1476 = vsub.f32 %v1393, %v1439
        %v1477 = vsub.f32 %v1346, %v1442
        %v1478 = vsub.f32 %v1395, %v1442
        %v1479 = vsub.f32 %v1349, %v1445
        %v1480 = vsub.f32 %v1398, %v1445
        %v1481 = vsub.f32 %v1351, %v1448
        %v1482 = vsub.f32 %v1400, %v1448
        %v1483 = vsub.f32 %v1354, %v1451
        %v1484 = vsub.f32 %v1403, %v1451
        %v1485 = vsub.f32 %v1356, %v1454
        %v1486 = vsub.f32 %v1405, %v1454
        %v1487 = vmul.f32 %v1455, 1.442695
        %v1488 = vpow.pop %v1487
        %v1489 = vmul.f32 %v1456, 1.442695
        %v1490 = vpow.pop %v1489
        %v1491 = vmul.f32 %v1457, 1.442695
        %v1492 = vpow.pop %v1491
        %v1493 = vmul.f32 %v1458, 1.442695
        %v1494 = vpow.pop %v1493
        %v1495 = vmul.f32 %v1459, 1.442695
        %v1496 = vpow.pop %v1495
        %v1497 = vmul.f32 %v1460, 1.442695
        %v1498 = vpow.pop %v1497
        %v1499 = vmul.f32 %v1461, 1.442695
        %v1500 = vpow.pop %v1499
        %v1501 = vmul.f32 %v1462, 1.442695
        %v1502 = vpow.pop %v1501
        %v1503 = vmul.f32 %v1463, 1.442695
        %v1504 = vpow.pop %v1503
        %v1505 = vmul.f32 %v1464, 1.442695
        %v1506 = vpow.pop %v1505
        %v1507 = vmul.f32 %v1465, 1.442695
        %v1508 = vpow.pop %v1507
        %v1509 = vmul.f32 %v1466, 1.442695
        %v1510 = vpow.pop %v1509
        %v1511 = vmul.f32 %v1467, 1.442695
        %v1512 = vpow.pop %v1511
        %v1513 = vmul.f32 %v1468, 1.442695
        %v1514 = vpow.pop %v1513
        %v1515 = vmul.f32 %v1469, 1.442695
        %v1516 = vpow.pop %v1515
        %v1517 = vmul.f32 %v1470, 1.442695
        %v1518 = vpow.pop %v1517
        %v1519 = vmul.f32 %v1471, 1.442695
        %v1520 = vpow.pop %v1519
        %v1521 = vmul.f32 %v1472, 1.442695
        %v1522 = vpow.pop %v1521
        %v1523 = vmul.f32 %v1473, 1.442695
        %v1524 = vpow.pop %v1523
        %v1525 = vmul.f32 %v1474, 1.442695
        %v1526 = vpow.pop %v1525
        %v1527 = vmul.f32 %v1475, 1.442695
        %v1528 = vpow.pop %v1527
        %v1529 = vmul.f32 %v1476, 1.442695
        %v1530 = vpow.pop %v1529
        %v1531 = vmul.f32 %v1477, 1.442695
        %v1532 = vpow.pop %v1531
        %v1533 = vmul.f32 %v1478, 1.442695
        %v1534 = vpow.pop %v1533
        %v1535 = vmul.f32 %v1479, 1.442695
        %v1536 = vpow.pop %v1535
        %v1537 = vmul.f32 %v1480, 1.442695
        %v1538 = vpow.pop %v1537
        %v1539 = vmul.f32 %v1481, 1.442695
        %v1540 = vpow.pop %v1539
        %v1541 = vmul.f32 %v1482, 1.442695
        %v1542 = vpow.pop %v1541
        %v1543 = vmul.f32 %v1483, 1.442695
        %v1544 = vpow.pop %v1543
        %v1545 = vmul.f32 %v1484, 1.442695
        %v1546 = vpow.pop %v1545
        %v1547 = vmul.f32 %v1485, 1.442695
        %v1548 = vpow.pop %v1547
        %v1549 = vmul.f32 %v1486, 1.442695
        %v1550 = vpow.pop %v1549
        %v1551 = vadd.f32 %v1488, %v1490
        %1552 = vadd.xlane.f32.xlu0 %v1551
        %v1553 = vpop.xlane.xlu0 %1552
        %v1554 = vadd.f32 %v1492, %v1494
        %1555 = vadd.xlane.f32.xlu0 %v1554
        %v1556 = vpop.xlane.xlu0 %1555
        %v1557 = vadd.f32 %v1496, %v1498
        %1558 = vadd.xlane.f32.xlu0 %v1557
        %v1559 = vpop.xlane.xlu0 %1558
        %v1560 = vadd.f32 %v1500, %v1502
        %1561 = vadd.xlane.f32.xlu0 %v1560
        %v1562 = vpop.xlane.xlu0 %1561
        %v1563 = vadd.f32 %v1504, %v1506
        %1564 = vadd.xlane.f32.xlu0 %v1563
        %v1565 = vpop.xlane.xlu0 %1564
        %v1566 = vadd.f32 %v1508, %v1510
        %1567 = vadd.xlane.f32.xlu0 %v1566
        %v1568 = vpop.xlane.xlu0 %1567
        %v1569 = vadd.f32 %v1512, %v1514
        %1570 = vadd.xlane.f32.xlu0 %v1569
        %v1571 = vpop.xlane.xlu0 %1570
        %v1572 = vadd.f32 %v1516, %v1518
        %1573 = vadd.xlane.f32.xlu0 %v1572
        %v1574 = vpop.xlane.xlu0 %1573
        %v1575 = vadd.f32 %v1520, %v1522
        %1576 = vadd.xlane.f32.xlu0 %v1575
        %v1577 = vpop.xlane.xlu0 %1576
        %v1578 = vadd.f32 %v1524, %v1526
        %1579 = vadd.xlane.f32.xlu0 %v1578
        %v1580 = vpop.xlane.xlu0 %1579
        %v1581 = vadd.f32 %v1528, %v1530
        %1582 = vadd.xlane.f32.xlu0 %v1581
        %v1583 = vpop.xlane.xlu0 %1582
        %v1584 = vadd.f32 %v1532, %v1534
        %1585 = vadd.xlane.f32.xlu0 %v1584
        %v1586 = vpop.xlane.xlu0 %1585
        %v1587 = vadd.f32 %v1536, %v1538
        %1588 = vadd.xlane.f32.xlu0 %v1587
        %v1589 = vpop.xlane.xlu0 %1588
        %v1590 = vadd.f32 %v1540, %v1542
        %1591 = vadd.xlane.f32.xlu0 %v1590
        %v1592 = vpop.xlane.xlu0 %1591
        %v1593 = vadd.f32 %v1544, %v1546
        %1594 = vadd.xlane.f32.xlu0 %v1593
        %v1595 = vpop.xlane.xlu0 %1594
        %v1596 = vadd.f32 %v1548, %v1550
        %1597 = vadd.xlane.f32.xlu0 %v1596
        %v1598 = vpop.xlane.xlu0 %1597
        %v1599 = vrcp.pop %v1553
        %v1600 = vrcp.pop %v1556
        %v1601 = vrcp.pop %v1559
        %v1602 = vrcp.pop %v1562
        %v1603 = vrcp.pop %v1565
        %v1604 = vrcp.pop %v1568
        %v1605 = vrcp.pop %v1571
        %v1606 = vrcp.pop %v1574
        %v1607 = vrcp.pop %v1577
        %v1608 = vrcp.pop %v1580
        %v1609 = vrcp.pop %v1583
        %v1610 = vrcp.pop %v1586
        %v1611 = vrcp.pop %v1589
        %v1612 = vrcp.pop %v1592
        %v1613 = vrcp.pop %v1595
        %v1614 = vrcp.pop %v1598
        %v1615 = vmul.f32 %v1488, %v1599
        %v1616 = vmul.f32 %v1490, %v1599
        %v1617 = vmul.f32 %v1492, %v1600
        %v1618 = vmul.f32 %v1494, %v1600
        %v1619 = vmul.f32 %v1496, %v1601
        %v1620 = vmul.f32 %v1498, %v1601
        %v1621 = vmul.f32 %v1500, %v1602
        %v1622 = vmul.f32 %v1502, %v1602
        %v1623 = vmul.f32 %v1504, %v1603
        %v1624 = vmul.f32 %v1506, %v1603
        %v1625 = vmul.f32 %v1508, %v1604
        %v1626 = vmul.f32 %v1510, %v1604
        %v1627 = vmul.f32 %v1512, %v1605
        %v1628 = vmul.f32 %v1514, %v1605
        %v1629 = vmul.f32 %v1516, %v1606
        %v1630 = vmul.f32 %v1518, %v1606
        %v1631 = vmul.f32 %v1520, %v1607
        %v1632 = vmul.f32 %v1522, %v1607
        %v1633 = vmul.f32 %v1524, %v1608
        %v1634 = vmul.f32 %v1526, %v1608
        %v1635 = vmul.f32 %v1528, %v1609
        %v1636 = vmul.f32 %v1530, %v1609
        %v1637 = vmul.f32 %v1532, %v1610
        %v1638 = vmul.f32 %v1534, %v1610
        %v1639 = vmul.f32 %v1536, %v1611
        %v1640 = vmul.f32 %v1538, %v1611
        %v1641 = vmul.f32 %v1540, %v1612
        %v1642 = vmul.f32 %v1542, %v1612
        %v1643 = vmul.f32 %v1544, %v1613
        %v1644 = vmul.f32 %v1546, %v1613
        %v1645 = vmul.f32 %v1548, %v1614
        %v1646 = vmul.f32 %v1550, %v1614
        %v1647 = vpack.c.bf16 %v1617, %v1615
        %v1648 = vpack.c.bf16 %v1618, %v1616
        %v1649 = vpack.c.bf16 %v1621, %v1619
        %v1650 = vpack.c.bf16 %v1622, %v1620
        %v1651 = vpack.c.bf16 %v1625, %v1623
        %v1652 = vpack.c.bf16 %v1626, %v1624
        %v1653 = vpack.c.bf16 %v1629, %v1627
        %v1654 = vpack.c.bf16 %v1630, %v1628
        %v1655 = vpack.c.bf16 %v1633, %v1631
        %v1656 = vpack.c.bf16 %v1634, %v1632
        %v1657 = vpack.c.bf16 %v1637, %v1635
        %v1658 = vpack.c.bf16 %v1638, %v1636
        %v1659 = vpack.c.bf16 %v1641, %v1639
        %v1660 = vpack.c.bf16 %v1642, %v1640
        %v1661 = vpack.c.bf16 %v1645, %v1643
        %v1662 = vpack.c.bf16 %v1646, %v1644
        %v1663 = vld [vmem:[#allocation3] sm:$0xff]
        %v1664 = vld [vmem:[#allocation3 + $0x8] sm:$0xff]
        %v1667 = vunpack.c.l.b16 %v1663
        %v1668 = vunpack.c.h.b16 %v1663
        %v1669 = vunpack.c.l.b16 %v1664
        %v1670 = vunpack.c.h.b16 %v1664
        %v1671 = vpack.c.b16 %v1669, %v1667
        %v1672 = vpack.c.b16 %v1670, %v1668
        %1675 = vmatpush.bf16.xpose.msra.mxu0 %v1661
        %1676 = vmatpush.bf16.xpose.msra.mxu0 %v1659
        %1677 = vmatpush.bf16.xpose.msra.mxu0 %v1657
        %1678 = vmatpush.bf16.xpose.msra.mxu0 %v1655
        %1679 = vmatpush.bf16.xpose.msra.mxu0 %v1653
        %1680 = vmatpush.bf16.xpose.msra.mxu0 %v1651
        %1681 = vmatpush.bf16.xpose.msra.mxu0 %v1649
        %1682 = vmatpush.bf16.xpose.msra.mxu0 %v1647
        %1683 = vmatmul.bf16.gmra.mxu0 %v1671
        %v1684 = vpop.f32.mrf.mxu0
        %v1685 = vadd.f32 0.0, %v1684
        %v1686 = vpop.f32.mrf.mxu0
        %v1687 = vadd.f32 0.0, %v1686
        %1688 = vdwg.mxu0
        %1689 = vmatpush.bf16.xpose.msra.mxu0 %v1662
        %1690 = vmatpush.bf16.xpose.msra.mxu0 %v1660
        %1691 = vmatpush.bf16.xpose.msra.mxu0 %v1658
        %1692 = vmatpush.bf16.xpose.msra.mxu0 %v1656
        %1693 = vmatpush.bf16.xpose.msra.mxu0 %v1654
        %1694 = vmatpush.bf16.xpose.msra.mxu0 %v1652
        %1695 = vmatpush.bf16.xpose.msra.mxu0 %v1650
        %1696 = vmatpush.bf16.xpose.msra.mxu0 %v1648
        %1697 = vmatmul.bf16.gmra.mxu0 %v1672
        %v1698 = vpop.f32.mrf.mxu0
        %v1699 = vadd.f32 %v1685, %v1698
        %v1700 = vpop.f32.mrf.mxu0
        %v1701 = vadd.f32 %v1687, %v1700
        %1702 = vdwg.mxu0
        %v1703 = vpack.c.bf16 %v1701, %v1699
        %v1704 = vld [vmem:[%s13] sm:$0xf]
        %v1705 = vld [vmem:[%s13 + $0x4] sm:$0xf]
        %v1706 = vld [vmem:[%s13 + $0x8] sm:$0xf]
        %v1707 = vld [vmem:[%s13 + $0xc] sm:$0xf]
        %v1708 = vld [vmem:[%s14] sm:$0xff]
        %v1709 = vld [vmem:[%s14 + $0x8] sm:$0xff]
        %v1710 = vld [vmem:[%s14 + $0x10] sm:$0xff]
        %v1711 = vld [vmem:[%s14 + $0x18] sm:$0xff]
        %1713 = vset.pattern.permute.xlu0 0
        %1714 = vperm.xlu0 %1713, %v1708
        %v1715 = vpop.permute.xlu0 %1714
        %1718 = vset.pattern.permute.xlu0 0
        %1719 = vperm.xlu0 %1718, %v1709
        %v1720 = vpop.permute.xlu0 %1719
        %1723 = vset.pattern.permute.xlu0 0
        %1724 = vperm.xlu0 %1723, %v1710
        %v1725 = vpop.permute.xlu0 %1724
        %1728 = vset.pattern.permute.xlu0 0
        %1729 = vperm.xlu0 %1728, %v1711
        %v1730 = vpop.permute.xlu0 %1729
        %v1736 = vunpack.c.l.b16 %v1704
        %v1737 = vunpack.c.l.b16 %v1705
        %v1738 = vunpack.c.l.b16 %v1706
        %v1739 = vunpack.c.l.b16 %v1707
        %v1740 = vpack.c.b16 %v1737, %v1736
        %v1741 = vpack.c.b16 %v1739, %v1738
        %v1743 = vsel %vm1234, %v1740, 0
        %v1746 = vsel %vm1234, %v1741, 0
        %1748 = vmatpush.bf16.msra.mxu0 0
        %1749 = vmatpush.bf16.msra.mxu0 0
        %1750 = vmatpush.bf16.msra.mxu0 0
        %1751 = vmatpush.bf16.msra.mxu0 0
        %1752 = vmatpush.bf16.msra.mxu0 0
        %1753 = vmatpush.bf16.msra.mxu0 0
        %1754 = vmatpush.bf16.msra.mxu0 0
        %1755 = vmatpush.bf16.msra.mxu0 %v1703
        %1756 = vmatmul.bf16.gmra.mxu0 %v1743
        %v1757 = vpop.f32.mrf.mxu0
        %v1758 = vadd.f32 %v1715, %v1757
        %v1759 = vpop.f32.mrf.mxu0
        %v1760 = vadd.f32 %v1720, %v1759
        %1761 = vmatmul.bf16.gmra.mxu0 %v1746
        %v1762 = vpop.f32.mrf.mxu0
        %v1763 = vadd.f32 %v1725, %v1762
        %v1764 = vpop.f32.mrf.mxu0
        %v1765 = vadd.f32 %v1730, %v1764
        %1766 = vdwg.mxu0
        %v1767 = vmax.f32 %v1758, 0.0
        %v1768 = vmax.f32 %v1760, 0.0
        %v1769 = vmax.f32 %v1763, 0.0
        %v1770 = vmax.f32 %v1765, 0.0
        %1771 = vst [vmem:[%s588] sm:$0xff] %v1767
        %1772 = vst [vmem:[%s588 + $0x8] sm:$0xff] %v1768
        %1773 = vst [vmem:[%s588 + $0x10] sm:$0xff] %v1769
        %1774 = vst [vmem:[%s588 + $0x18] sm:$0xff] %v1770
        %s1775 = sand.u32 %s389, 1
        %s1776 = scalar_lea.sflag [#allocation6], %s1775
        %s1777 = sand.u32 %s389, 1
        %s1778 = smul.addr %s1777, 32
        %s1779 = scalar_lea.vmem [#allocation9], %s1778
        // Predicated region
        $region93: #{tpu_custom_call.1} parent=79 // pred_check
          %p1780 = pneg %p399
        $region94: #{tpu_custom_call.1} parent=79 // pred_check_branch
          %1782 = sbr.rel (%p1780) target = $region96
        $region95: #{tpu_custom_call.1} parent=79 // pred_region
          %1784 = vsyncadd %s1776, 0
          %s1785 = smul.addr %s39, 8
          %s1786 = sadd.s32 %s40, %s1785
          %s1787 = smul.addr %s1786, 8
          %s1788 = scalar_lea.hbm %s15, %s1787
          %s1789 = sshll.u32 %s1779, 4
          %s1790 = int_to_ptr.vmem [resolvable:$true] %s1789
          %s1791 = sshll.u32 %s1788, 4
          %s1792 = int_to_ptr.hbm [resolvable:$true] %s1791
          %1797 = dma.vmem_to_hbm [thread:$0]  %s1790, 512, %s1792, %s1776, 128, 256, 8
        $region96: #{tpu_custom_call.1} parent=79 // pred_fallthru
          _
      $region80: #{tpu_custom_call.1} parent=5 // pred_fallthru
        _
      %p1798 = scmp.le.s32.totalorder 2, %s30
      // Predicated region
      $region97: #{tpu_custom_call.1} parent=5 // pred_check
        %p1799 = pneg %p1798
      $region98: #{tpu_custom_call.1} parent=5 // pred_check_branch
        %1801 = sbr.rel (%p1799) target = $region100
      $region99: #{tpu_custom_call.1} parent=5 // pred_region
        %s1802 = ssub.s32 %s30, 2
        // Predicated region
        $region101: #{tpu_custom_call.1} parent=99 // pred_check
          %p1803 = pneg %p405
        $region102: #{tpu_custom_call.1} parent=99 // pred_check_branch
          %1805 = sbr.rel (%p1803) target = $region104
        $region103: #{tpu_custom_call.1} parent=99 // pred_region
          %s1806 = sand.u32 %s390, 1
          %s1807 = scalar_lea.sflag [#allocation6], %s1806
          %s1808 = sand.u32 %s390, 1
          %s1809 = smul.addr %s1808, 32
          %s1810 = scalar_lea.vmem [#allocation9], %s1809
          %1812 = dma.done %s1807, 512
        $region104: #{tpu_custom_call.1} parent=99 // pred_fallthru
          _
      $region100: #{tpu_custom_call.1} parent=5 // pred_fallthru
        _
    $region6: #{tpu_custom_call.1} parent=1 // loop_footer
      %s34 = sadd.s32 1, %s30
    $region7: #{tpu_custom_call.1} parent=1 // loop_footer_branch
      %29 = sbr.rel target = $region3
    $region8: #{tpu_custom_call.1} parent=1 // loop_exit
      _
    %1813 = vsyncpa [#allocation5], 1
    %s1814 = scalar_lea.sflag [#allocation5], 1
    %1815 = vsyncpa %s1814, 1
    %1816 = vsyncpa [#allocation8], 1
    %s1817 = scalar_lea.sflag [#allocation8], 1
    %1818 = vsyncpa %s1817, 1
    %1819 = vsyncpa [#allocation6], 1
    %s1820 = scalar_lea.sflag [#allocation6], 1
    %1821 = vsyncpa %s1820, 1

</llo_original>
